<compile_context>
chip_gen: v6e
topology: v6e:2x2x1
jax: 0.10.0
libtpu: 0.0.40
codegen_flags: <defaults>
</compile_context>

<pallas_src>
import numpy as np
import jax
import jax.numpy as jnp
from jax import lax
from jax.experimental import pallas as pl
from jax.experimental.pallas import tpu as pltpu

EPS = 1e-5


# ---------------------------------------------------------------------------
# Host-side (one-time) weight / mask packing helpers
# ---------------------------------------------------------------------------
def _convt_width_mat(w, S):
    """ConvTranspose2d(4,2,1) weights (4,4,Ci,Co) -> fused width matrix (S*Ci, 4*2S*Co).

    Column block k holds the width-direction conv + channel mixing for kernel row ky=k,
    so one (R, S*Ci) x (S*Ci, 4*2S*Co) matmul yields all four row-tap partial products.
    """
    _, _, ci, co = w.shape
    Wo = 2 * S * co
    M = np.zeros((S * ci, 4 * Wo), np.float32)
    for k in range(4):
        for xi in range(S):
            for xo in range(2 * S):
                kx = xo + 1 - 2 * xi                      # xo = 2*xi + kx - pad
                if 0 <= kx < 4:
                    M[xi * ci:(xi + 1) * ci,
                      k * Wo + xo * co:k * Wo + (xo + 1) * co] = w[k, kx]
    return M


def _conv3_width_mat(w, S):
    """Conv2d(3,1,1) weights (3,3,Ci,Co) -> fused width matrix (S*Ci, 3*S*Co)."""
    _, _, ci, co = w.shape
    Wo = S * co
    N = np.zeros((S * ci, 3 * Wo), np.float32)
    for k in range(3):
        for xi in range(S):
            for xo in range(S):
                kx = xi - xo + 1                          # xi = xo + kx - pad
                if 0 <= kx < 3:
                    N[xi * ci:(xi + 1) * ci,
                      k * Wo + xo * co:k * Wo + (xo + 1) * co] = w[k, kx]
    return N


def _convt_row_scatter(B, S):
    """0/1 matrix (B*2S, 4*B*S): sums the stacked per-tap width products into the
    2x row-upsampled, halo-zeroed output slab in a single matmul."""
    R = B * S
    A = np.zeros((2 * R, 4 * R), np.float32)
    for b in range(B):
        for yo in range(2 * S):
            for yi in range(S):
                ky = yo - 2 * yi + 1                      # yo = 2*yi + ky - pad
                if 0 <= ky < 4:
                    A[b * 2 * S + yo, ky * R + b * S + yi] = 1.0
    return A


def _conv3_row_scatter(B, S):
    """0/1 matrix (B*S, 3*B*S) for the k=3, s=1, p=1 output conv row taps."""
    R = B * S
    A = np.zeros((R, 3 * R), np.float32)
    for b in range(B):
        for yo in range(S):
            for yi in range(S):
                ky = yi - yo + 1                          # yi = yo + ky - pad
                if 0 <= ky < 3:
                    A[b * S + yo, ky * R + b * S + yi] = 1.0
    return A


def _bn_pool_mat(W, C, n):
    """(W*C, W*C) matrix: [sum(x); sum(x^2)] @ pool gives per-channel means already
    re-expanded to the (w,c) lane layout (replaces the old gather + scatter dots)."""
    lane = np.arange(W * C)
    return ((lane[:, None] % C) == (lane[None, :] % C)).astype(np.float32) / float(n)


# ---------------------------------------------------------------------------
# In-kernel building blocks (pure jnp, traced inside the Pallas kernel)
# ---------------------------------------------------------------------------
def _bn2d_relu(X, pool, g_lane, be_lane):
    """BatchNorm2d (training batch stats, biased var, eps=1e-5) + ReLU on an NHWC slab
    (rows, W*C). Stats stay f32; result is returned in bf16, ready for the MXU."""
    s1 = jnp.sum(X, axis=0, keepdims=True)
    s2 = jnp.sum(X * X, axis=0, keepdims=True)
    stats = jnp.concatenate([s1, s2], axis=0)                            # (2, W*C)
    pooled = jnp.dot(stats, pool, preferred_element_type=jnp.float32)    # (2, W*C)
    mu = pooled[0:1]
    var = jnp.maximum(pooled[1:2] - mu * mu, 0.0)        # clamp single-pass variance
    scale = g_lane * lax.rsqrt(var + EPS)
    shift = be_lane - mu * scale
    return jnp.maximum(X * scale + shift, 0.0).astype(jnp.bfloat16)


def _conv_rowtaps(Xb, Mall, Aall, bias_lane, n_taps, Wo):
    """Spatial conv as 2 bf16 MXU matmuls: one fused width/channel matmul producing all
    row-tap partials, one 0/1 row-scatter matmul summing / interleaving them."""
    P = jnp.dot(Xb, Mall, preferred_element_type=jnp.float32)            # (R, n_taps*Wo)
    Pstk = jnp.concatenate([P[:, k * Wo:(k + 1) * Wo] for k in range(n_taps)], axis=0)
    Y = jnp.dot(Aall, Pstk.astype(jnp.bfloat16), preferred_element_type=jnp.float32)
    return Y + bias_lane


def _build_decoder_kernel(n_stages, stage_wo, final_wo):
    def kernel(*refs):
        o_ref = refs[-1]
        xrep, w1t, b1t, g1t, be1t, blk, w2s, b2slab = refs[:8]
        pos = 8

        # Linear(in->lin) -> BatchNorm1d (batch stats) -> ReLU, on the H0-row-replicated,
        # H0-column-tiled problem (replication leaves the batch statistics unchanged and
        # makes the fc2 output land directly in (b, h) slab row order).
        h = jnp.dot(xrep[...], w1t[...], preferred_element_type=jnp.float32) + b1t[...]
        mu = jnp.mean(h, axis=0, keepdims=True)
        var = jnp.maximum(jnp.mean(h * h, axis=0, keepdims=True) - mu * mu, 0.0)
        hn = jnp.maximum((h - mu) * lax.rsqrt(var + EPS) * g1t[...] + be1t[...], 0.0)

        # Linear(lin -> C0*H0*W0) + View, emitted directly as the NHWC slab (B*H0, W0*C0):
        # the host-built 0/1 mask keeps only row r's own h = r % H0 weight block against
        # the h-stacked fc2 weights; bias is a host-pre-tiled slab.
        hb = (hn * blk[...]).astype(jnp.bfloat16)
        X = jnp.dot(hb, w2s[...], preferred_element_type=jnp.float32) + b2slab[...]

        # Upsampling stages: BN2d -> ReLU -> ConvTranspose2d(4,2,1)
        for s in range(n_stages):
            pool, g_l, be_l, Mall, Aall, b_l = refs[pos:pos + 6]
            pos += 6
            Xb = _bn2d_relu(X, pool[...], g_l[...], be_l[...])
            X = _conv_rowtaps(Xb, Mall[...], Aall[...], b_l[...], 4, stage_wo[s])

        # Final: BN2d -> ReLU -> Conv2d(3,1,1)
        pool, g_l, be_l, Nall, A3, bf_l = refs[pos:pos + 6]
        Xb = _bn2d_relu(X, pool[...], g_l[...], be_l[...])
        o_ref[...] = _conv_rowtaps(Xb, Nall[...], A3[...], bf_l[...], 3, final_wo)

    return kernel


# ---------------------------------------------------------------------------
# Wrapper: weight packing + single pallas_call
# ---------------------------------------------------------------------------
def make_decoder(p, *, B, lin_ch, init_ch, init_size, out_ch, out_size):
    H0 = init_size
    stage_cfg = []
    ch, size = init_ch, init_size
    while size < out_size:
        stage_cfg.append((ch, ch // 2, size))              # (Cin, Cout, spatial size)
        ch, size = ch // 2, size * 2
    f_ch, f_size = ch, size
    assert f_size == out_size and len(stage_cfg) == len(p["stages"])

    f32 = lambda a: np.asarray(a, np.float32)
    bf16 = lambda a: jnp.asarray(a, dtype=jnp.bfloat16)

    # fc1 params tiled across the H0 column blocks.
    w1t = np.tile(f32(p["w1"]), (1, H0))
    b1t = np.tile(f32(p["b1"]), (1, H0))
    g1t = np.tile(f32(p["g1"]), (1, H0))
    be1t = np.tile(f32(p["be1"]), (1, H0))
    # Host-built 0/1 block mask: slab row r keeps only its own h = r % H0 weight block.
    rows = np.arange(B * H0)[:, None]
    cols = np.arange(H0 * lin_ch)[None, :]
    blk = ((cols // lin_ch) == (rows % H0)).astype(np.float32)
    # fc2 weights permuted NCHW->NHWC and stacked per output row h; bias pre-tiled into a
    # full (B*H0, W0*C0) slab.
    w2p = f32(p["w2"]).reshape(lin_ch, init_ch, H0, H0).transpose(0, 2, 3, 1)
    w2s = (w2p.reshape(lin_ch, H0, H0 * init_ch)
              .transpose(1, 0, 2).reshape(H0 * lin_ch, H0 * init_ch))
    b2m = f32(p["b2"]).reshape(init_ch, H0, H0).transpose(1, 2, 0).reshape(H0, H0 * init_ch)
    b2slab = np.tile(b2m, (B, 1))

    const_args = [jnp.asarray(w1t), jnp.asarray(b1t), jnp.asarray(g1t), jnp.asarray(be1t),
                  jnp.asarray(blk), bf16(w2s), jnp.asarray(b2slab)]

    stage_wo = []
    for (ci, co, s), sp in zip(stage_cfg, p["stages"]):
        pool = _bn_pool_mat(s, ci, B * s * s)              # n = B*H*W samples per channel
        g_l = np.tile(f32(sp["g"]), (1, s))
        be_l = np.tile(f32(sp["be"]), (1, s))
        Mall = _convt_width_mat(f32(sp["w"]), s)           # (s*ci, 4*2s*co)
        Aall = _convt_row_scatter(B, s)                    # (B*2s, 4*B*s)
        b_l = np.tile(f32(sp["b"]), (1, 2 * s))
        stage_wo.append(2 * s * co)
        const_args += [jnp.asarray(pool), jnp.asarray(g_l), jnp.asarray(be_l),
                       bf16(Mall), bf16(Aall), jnp.asarray(b_l)]

    pool_f = _bn_pool_mat(f_size, f_ch, B * f_size * f_size)
    g_f = np.tile(f32(p["g_f"]), (1, f_size))
    be_f = np.tile(f32(p["be_f"]), (1, f_size))
    Nall = _conv3_width_mat(f32(p["w_f"]), f_size)         # (S*f_ch, 3*S*out_ch)
    A3 = _conv3_row_scatter(B, f_size)                     # (B*S, 3*B*S)
    bf_l = np.tile(f32(p["b_f"]), (1, f_size))
    final_wo = f_size * out_ch
    const_args += [jnp.asarray(pool_f), jnp.asarray(g_f), jnp.asarray(be_f),
                   bf16(Nall), bf16(A3), jnp.asarray(bf_l)]

    kernel = _build_decoder_kernel(len(stage_cfg), tuple(stage_wo), final_wo)
    vmem = pl.BlockSpec(memory_space=pltpu.MemorySpace.VMEM)
    call = pl.pallas_call(
        kernel,
        out_shape=jax.ShapeDtypeStruct((B * f_size, f_size * out_ch), jnp.float32),
        in_specs=[vmem] * (1 + len(const_args)),
        out_specs=vmem,
        # Toy config uses <2 MiB of VMEM; keep an explicit budget so scaling the config
        # fails loudly instead of spilling (v7x has only 64 MiB physical VMEM).
        compiler_params=pltpu.CompilerParams(vmem_limit_bytes=32 * 1024 * 1024),
    )

    @jax.jit
    def apply(x):
        xrep = jnp.repeat(x.astype(jnp.float32), H0, axis=0)   # (B*H0, in_ch)
        slab = call(xrep, *const_args)                         # (B*S, S*out_ch) NHWC slab
        y = slab.reshape(B, f_size, f_size, out_ch)
        return jnp.transpose(y, (0, 3, 1, 2))                  # NCHW

    return apply


# ---------------------------------------------------------------------------
# Parameter init (deterministic, synthetic), matching the PyTorch module layout
# ---------------------------------------------------------------------------
def init_params(key, *, in_ch, lin_ch, init_ch, init_size, out_ch, out_size):
    ks = iter(jax.random.split(key, 64))

    def nrm(shape, scale):
        return scale * jax.random.normal(next(ks), shape, dtype=jnp.float32)

    p = {
        "w1": nrm((in_ch, lin_ch), 0.1),
        "b1": nrm((1, lin_ch), 0.05),
        "g1": 1.0 + nrm((1, lin_ch), 0.1),
        "be1": nrm((1, lin_ch), 0.1),
    }
    flat = init_ch * init_size * init_size
    p["w2"] = nrm((lin_ch, flat), 0.1)
    p["b2"] = nrm((1, flat), 0.05)

    stages = []
    ch, size = init_ch, init_size
    while size < out_size:
        co = ch // 2
        stages.append(dict(
            g=1.0 + nrm((1, ch), 0.1),
            be=nrm((1, ch), 0.1),
            w=nrm((4, 4, ch, co), 0.1),      # ConvTranspose weight, (ky, kx, in, out)
            b=nrm((1, co), 0.05),
        ))
        ch, size = co, size * 2
    p["stages"] = stages

    p["g_f"] = 1.0 + nrm((1, ch), 0.1)
    p["be_f"] = nrm((1, ch), 0.1)
    p["w_f"] = nrm((3, 3, ch, out_ch), 0.1)
    p["b_f"] = nrm((1, out_ch), 0.05)
    return p


# Pure-JAX f32 reference (same math, XLA convolutions) for the correctness check.
def _bn_train(t, g, be, axes):
    mu = jnp.mean(t, axis=axes, keepdims=True)
    var = jnp.mean(jnp.square(t - mu), axis=axes, keepdims=True)
    shape = (1,) * (t.ndim - 1) + (-1,)
    return (t - mu) * lax.rsqrt(var + EPS) * g.reshape(shape) + be.reshape(shape)


def reference_forward(x, p, init_ch, init_size):
    B = x.shape[0]
    h = x @ p["w1"] + p["b1"]
    h = jnp.maximum(_bn_train(h, p["g1"], p["be1"], (0,)), 0.0)
    t = h @ p["w2"] + p["b2"]
    t = t.reshape(B, init_ch, init_size, init_size).transpose(0, 2, 3, 1)
    for s in p["stages"]:
        t = jnp.maximum(_bn_train(t, s["g"], s["be"], (0, 1, 2)), 0.0)
        t = lax.conv_general_dilated(
            t, s["w"][::-1, ::-1], window_strides=(1, 1),
            padding=((2, 2), (2, 2)), lhs_dilation=(2, 2),
            dimension_numbers=("NHWC", "HWIO", "NHWC")) + s["b"].reshape(1, 1, 1, -1)
    t = jnp.maximum(_bn_train(t, p["g_f"], p["be_f"], (0, 1, 2)), 0.0)
    y = lax.conv_general_dilated(
        t, p["w_f"], window_strides=(1, 1), padding=((1, 1), (1, 1)),
        dimension_numbers=("NHWC", "HWIO", "NHWC")) + p["b_f"].reshape(1, 1, 1, -1)
    return y.transpose(0, 3, 1, 2)


if __name__ == "__main__":
    # Small config consistent with the module's structure:
    # input_channels=16, init_linear_channels=32, init_channels=16, init_size=8,
    # output_channels=4, output_size=32  -> two ConvTranspose upsampling stages.
    B, IN_CH = 2, 16
    LIN_CH, INIT_CH, INIT_SIZE = 32, 16, 8
    OUT_CH, OUT_SIZE = 4, 32

    key = jax.random.PRNGKey(0)
    kx, kp = jax.random.split(key)
    x = jax.random.normal(kx, (B, IN_CH), dtype=jnp.float32)
    params = init_params(kp, in_ch=IN_CH, lin_ch=LIN_CH, init_ch=INIT_CH,
                         init_size=INIT_SIZE, out_ch=OUT_CH, out_size=OUT_SIZE)

    decoder = make_decoder(params, B=B, lin_ch=LIN_CH, init_ch=INIT_CH,
                           init_size=INIT_SIZE, out_ch=OUT_CH, out_size=OUT_SIZE)

    out = jax.block_until_ready(decoder(x))
    ref = jax.block_until_ready(reference_forward(x, params, INIT_CH, INIT_SIZE))

    assert out.shape == (B, OUT_CH, OUT_SIZE, OUT_SIZE), out.shape
    # All conv / fc2 MXU operands (activations, width matrices, row-scatter matrices and
    # the stacked tap partials) are bf16 with f32 accumulation, so compare against the
    # pure-f32 reference at a correspondingly relaxed tolerance.
    np.testing.assert_allclose(np.asarray(out), np.asarray(ref), rtol=3e-2, atol=3e-2)
    print("KERNEL_OK")
</pallas_src>

<mosaic_0001>
module attributes {stable_mosaic.version = 11 : i64} {
  func.func @kernel(%arg0: memref<16x16xf32, #tpu.memory_space<vmem>>, %arg1: memref<16x256xf32, #tpu.memory_space<vmem>>, %arg2: memref<1x256xf32, #tpu.memory_space<vmem>>, %arg3: memref<1x256xf32, #tpu.memory_space<vmem>>, %arg4: memref<1x256xf32, #tpu.memory_space<vmem>>, %arg5: memref<16x256xf32, #tpu.memory_space<vmem>>, %arg6: memref<256x128xbf16, #tpu.memory_space<vmem>>, %arg7: memref<16x128xf32, #tpu.memory_space<vmem>>, %arg8: memref<128x128xf32, #tpu.memory_space<vmem>>, %arg9: memref<1x128xf32, #tpu.memory_space<vmem>>, %arg10: memref<1x128xf32, #tpu.memory_space<vmem>>, %arg11: memref<128x512xbf16, #tpu.memory_space<vmem>>, %arg12: memref<32x64xbf16, #tpu.memory_space<vmem>>, %arg13: memref<1x128xf32, #tpu.memory_space<vmem>>, %arg14: memref<128x128xf32, #tpu.memory_space<vmem>>, %arg15: memref<1x128xf32, #tpu.memory_space<vmem>>, %arg16: memref<1x128xf32, #tpu.memory_space<vmem>>, %arg17: memref<128x512xbf16, #tpu.memory_space<vmem>>, %arg18: memref<64x128xbf16, #tpu.memory_space<vmem>>, %arg19: memref<1x128xf32, #tpu.memory_space<vmem>>, %arg20: memref<128x128xf32, #tpu.memory_space<vmem>>, %arg21: memref<1x128xf32, #tpu.memory_space<vmem>>, %arg22: memref<1x128xf32, #tpu.memory_space<vmem>>, %arg23: memref<128x384xbf16, #tpu.memory_space<vmem>>, %arg24: memref<64x192xbf16, #tpu.memory_space<vmem>>, %arg25: memref<1x128xf32, #tpu.memory_space<vmem>>, %arg26: memref<64x128xf32, #tpu.memory_space<vmem>>) attributes {dimension_semantics = [], scalar_prefetch = 0 : i64, scratch_operands = 0 : i64, tpu.core_type = #tpu.core_type<tc>} {
    %c0 = arith.constant 0 : index
    %c0_0 = arith.constant 0 : index
    %0 = vector.load %arg0[%c0, %c0_0] : memref<16x16xf32, #tpu.memory_space<vmem>>, vector<16x16xf32>
    %c0_1 = arith.constant 0 : index
    %c0_2 = arith.constant 0 : index
    %1 = vector.load %arg1[%c0_1, %c0_2] : memref<16x256xf32, #tpu.memory_space<vmem>>, vector<16x256xf32>
    %cst = arith.constant dense<0.000000e+00> : vector<16x256xf32>
    %2 = tpu.matmul %0, %1, %cst {dimension_numbers = #tpu.dot_dimension_numbers<[1], [0], [0], [1], [0, 0, 1, 1], [], []>} : vector<16x16xf32>, vector<16x256xf32>, vector<16x256xf32> -> vector<16x256xf32>
    %c0_3 = arith.constant 0 : index
    %c0_4 = arith.constant 0 : index
    %3 = vector.load %arg2[%c0_3, %c0_4] : memref<1x256xf32, #tpu.memory_space<vmem>>, vector<1x256xf32>
    %4 = vector.broadcast %3 : vector<1x256xf32> to vector<16x256xf32>
    %5 = arith.addf %2, %4 : vector<16x256xf32>
    %cst_5 = arith.constant dense<0.000000e+00> : vector<256xf32>
    %6 = vector.multi_reduction <add>, %5, %cst_5 [0] : vector<16x256xf32> to vector<256xf32>
    %7 = vector.shape_cast %6 : vector<256xf32> to vector<1x256xf32>
    %cst_6 = arith.constant 1.600000e+01 : f32
    %8 = vector.broadcast %cst_6 : f32 to vector<1x256xf32>
    %9 = arith.divf %7, %8 : vector<1x256xf32>
    %10 = arith.mulf %5, %5 : vector<16x256xf32>
    %cst_7 = arith.constant dense<0.000000e+00> : vector<256xf32>
    %11 = vector.multi_reduction <add>, %10, %cst_7 [0] : vector<16x256xf32> to vector<256xf32>
    %12 = vector.shape_cast %11 : vector<256xf32> to vector<1x256xf32>
    %cst_8 = arith.constant 1.600000e+01 : f32
    %13 = vector.broadcast %cst_8 : f32 to vector<1x256xf32>
    %14 = arith.divf %12, %13 : vector<1x256xf32>
    %15 = arith.mulf %9, %9 : vector<1x256xf32>
    %16 = arith.subf %14, %15 : vector<1x256xf32>
    %cst_9 = arith.constant 0.000000e+00 : f32
    %17 = vector.broadcast %cst_9 : f32 to vector<1x256xf32>
    %18 = arith.maximumf %16, %17 : vector<1x256xf32>
    %19 = vector.broadcast %9 : vector<1x256xf32> to vector<16x256xf32>
    %20 = arith.subf %5, %19 : vector<16x256xf32>
    %cst_10 = arith.constant 9.99999974E-6 : f32
    %21 = vector.broadcast %cst_10 : f32 to vector<1x256xf32>
    %22 = arith.addf %18, %21 : vector<1x256xf32>
    %23 = math.rsqrt %22 : vector<1x256xf32>
    %24 = vector.broadcast %23 : vector<1x256xf32> to vector<16x256xf32>
    %25 = arith.mulf %20, %24 : vector<16x256xf32>
    %c0_11 = arith.constant 0 : index
    %c0_12 = arith.constant 0 : index
    %26 = vector.load %arg3[%c0_11, %c0_12] : memref<1x256xf32, #tpu.memory_space<vmem>>, vector<1x256xf32>
    %27 = vector.broadcast %26 : vector<1x256xf32> to vector<16x256xf32>
    %28 = arith.mulf %25, %27 : vector<16x256xf32>
    %c0_13 = arith.constant 0 : index
    %c0_14 = arith.constant 0 : index
    %29 = vector.load %arg4[%c0_13, %c0_14] : memref<1x256xf32, #tpu.memory_space<vmem>>, vector<1x256xf32>
    %30 = vector.broadcast %29 : vector<1x256xf32> to vector<16x256xf32>
    %31 = arith.addf %28, %30 : vector<16x256xf32>
    %cst_15 = arith.constant 0.000000e+00 : f32
    %32 = vector.broadcast %cst_15 : f32 to vector<16x256xf32>
    %33 = arith.maximumf %31, %32 : vector<16x256xf32>
    %c0_16 = arith.constant 0 : index
    %c0_17 = arith.constant 0 : index
    %34 = vector.load %arg5[%c0_16, %c0_17] : memref<16x256xf32, #tpu.memory_space<vmem>>, vector<16x256xf32>
    %35 = arith.mulf %33, %34 : vector<16x256xf32>
    %36 = arith.truncf %35 : vector<16x256xf32> to vector<16x256xbf16>
    %c0_18 = arith.constant 0 : index
    %c0_19 = arith.constant 0 : index
    %37 = vector.load %arg6[%c0_18, %c0_19] : memref<256x128xbf16, #tpu.memory_space<vmem>>, vector<256x128xbf16>
    %cst_20 = arith.constant dense<0.000000e+00> : vector<16x128xf32>
    %38 = tpu.matmul %36, %37, %cst_20 {dimension_numbers = #tpu.dot_dimension_numbers<[1], [0], [0], [1], [0, 0, 1, 1], [], []>} : vector<16x256xbf16>, vector<256x128xbf16>, vector<16x128xf32> -> vector<16x128xf32>
    %c0_21 = arith.constant 0 : index
    %c0_22 = arith.constant 0 : index
    %39 = vector.load %arg7[%c0_21, %c0_22] : memref<16x128xf32, #tpu.memory_space<vmem>>, vector<16x128xf32>
    %40 = arith.addf %38, %39 : vector<16x128xf32>
    %c0_23 = arith.constant 0 : index
    %c0_24 = arith.constant 0 : index
    %41 = vector.load %arg8[%c0_23, %c0_24] : memref<128x128xf32, #tpu.memory_space<vmem>>, vector<128x128xf32>
    %c0_25 = arith.constant 0 : index
    %c0_26 = arith.constant 0 : index
    %42 = vector.load %arg9[%c0_25, %c0_26] : memref<1x128xf32, #tpu.memory_space<vmem>>, vector<1x128xf32>
    %c0_27 = arith.constant 0 : index
    %c0_28 = arith.constant 0 : index
    %43 = vector.load %arg10[%c0_27, %c0_28] : memref<1x128xf32, #tpu.memory_space<vmem>>, vector<1x128xf32>
    %cst_29 = arith.constant dense<0.000000e+00> : vector<128xf32>
    %44 = vector.multi_reduction <add>, %40, %cst_29 [0] : vector<16x128xf32> to vector<128xf32>
    %45 = vector.shape_cast %44 : vector<128xf32> to vector<1x128xf32>
    %46 = arith.mulf %40, %40 : vector<16x128xf32>
    %cst_30 = arith.constant dense<0.000000e+00> : vector<128xf32>
    %47 = vector.multi_reduction <add>, %46, %cst_30 [0] : vector<16x128xf32> to vector<128xf32>
    %48 = vector.shape_cast %47 : vector<128xf32> to vector<1x128xf32>
    %49 = tpu.concatenate %45, %48 in 0 : vector<1x128xf32>, vector<1x128xf32> -> vector<2x128xf32>
    %cst_31 = arith.constant dense<0.000000e+00> : vector<2x128xf32>
    %50 = tpu.matmul %49, %41, %cst_31 {dimension_numbers = #tpu.dot_dimension_numbers<[1], [0], [0], [1], [0, 0, 1, 1], [], []>} : vector<2x128xf32>, vector<128x128xf32>, vector<2x128xf32> -> vector<2x128xf32>
    %51 = vector.extract_strided_slice %50 {offsets = [0, 0], sizes = [1, 128], strides = [1, 1]} : vector<2x128xf32> to vector<1x128xf32>
    %52 = vector.extract_strided_slice %50 {offsets = [1, 0], sizes = [1, 128], strides = [1, 1]} : vector<2x128xf32> to vector<1x128xf32>
    %53 = arith.mulf %51, %51 : vector<1x128xf32>
    %54 = arith.subf %52, %53 : vector<1x128xf32>
    %cst_32 = arith.constant 0.000000e+00 : f32
    %55 = vector.broadcast %cst_32 : f32 to vector<1x128xf32>
    %56 = arith.maximumf %54, %55 : vector<1x128xf32>
    %cst_33 = arith.constant 9.99999974E-6 : f32
    %57 = vector.broadcast %cst_33 : f32 to vector<1x128xf32>
    %58 = arith.addf %56, %57 : vector<1x128xf32>
    %59 = math.rsqrt %58 : vector<1x128xf32>
    %60 = arith.mulf %42, %59 : vector<1x128xf32>
    %61 = arith.mulf %51, %60 : vector<1x128xf32>
    %62 = arith.subf %43, %61 : vector<1x128xf32>
    %63 = vector.broadcast %60 : vector<1x128xf32> to vector<16x128xf32>
    %64 = arith.mulf %40, %63 : vector<16x128xf32>
    %65 = vector.broadcast %62 : vector<1x128xf32> to vector<16x128xf32>
    %66 = arith.addf %64, %65 : vector<16x128xf32>
    %cst_34 = arith.constant 0.000000e+00 : f32
    %67 = vector.broadcast %cst_34 : f32 to vector<16x128xf32>
    %68 = arith.maximumf %66, %67 : vector<16x128xf32>
    %69 = arith.truncf %68 : vector<16x128xf32> to vector<16x128xbf16>
    %c0_35 = arith.constant 0 : index
    %c0_36 = arith.constant 0 : index
    %70 = vector.load %arg11[%c0_35, %c0_36] : memref<128x512xbf16, #tpu.memory_space<vmem>>, vector<128x512xbf16>
    %c0_37 = arith.constant 0 : index
    %c0_38 = arith.constant 0 : index
    %71 = vector.load %arg12[%c0_37, %c0_38] : memref<32x64xbf16, #tpu.memory_space<vmem>>, vector<32x64xbf16>
    %c0_39 = arith.constant 0 : index
    %c0_40 = arith.constant 0 : index
    %72 = vector.load %arg13[%c0_39, %c0_40] : memref<1x128xf32, #tpu.memory_space<vmem>>, vector<1x128xf32>
    %cst_41 = arith.constant dense<0.000000e+00> : vector<16x512xf32>
    %73 = tpu.matmul %69, %70, %cst_41 {dimension_numbers = #tpu.dot_dimension_numbers<[1], [0], [0], [1], [0, 0, 1, 1], [], []>} : vector<16x128xbf16>, vector<128x512xbf16>, vector<16x512xf32> -> vector<16x512xf32>
    %74 = vector.extract_strided_slice %73 {offsets = [0, 0], sizes = [16, 128], strides = [1, 1]} : vector<16x512xf32> to vector<16x128xf32>
    %75 = vector.extract_strided_slice %73 {offsets = [0, 128], sizes = [16, 128], strides = [1, 1]} : vector<16x512xf32> to vector<16x128xf32>
    %76 = vector.extract_strided_slice %73 {offsets = [0, 256], sizes = [16, 128], strides = [1, 1]} : vector<16x512xf32> to vector<16x128xf32>
    %77 = vector.extract_strided_slice %73 {offsets = [0, 384], sizes = [16, 128], strides = [1, 1]} : vector<16x512xf32> to vector<16x128xf32>
    %78 = tpu.concatenate %74, %75, %76, %77 in 0 : vector<16x128xf32>, vector<16x128xf32>, vector<16x128xf32>, vector<16x128xf32> -> vector<64x128xf32>
    %79 = arith.truncf %78 : vector<64x128xf32> to vector<64x128xbf16>
    %cst_42 = arith.constant dense<0.000000e+00> : vector<32x128xf32>
    %80 = tpu.matmul %71, %79, %cst_42 {dimension_numbers = #tpu.dot_dimension_numbers<[1], [0], [0], [1], [0, 0, 1, 1], [], []>} : vector<32x64xbf16>, vector<64x128xbf16>, vector<32x128xf32> -> vector<32x128xf32>
    %81 = vector.broadcast %72 : vector<1x128xf32> to vector<32x128xf32>
    %82 = arith.addf %80, %81 : vector<32x128xf32>
    %c0_43 = arith.constant 0 : index
    %c0_44 = arith.constant 0 : index
    %83 = vector.load %arg14[%c0_43, %c0_44] : memref<128x128xf32, #tpu.memory_space<vmem>>, vector<128x128xf32>
    %c0_45 = arith.constant 0 : index
    %c0_46 = arith.constant 0 : index
    %84 = vector.load %arg15[%c0_45, %c0_46] : memref<1x128xf32, #tpu.memory_space<vmem>>, vector<1x128xf32>
    %c0_47 = arith.constant 0 : index
    %c0_48 = arith.constant 0 : index
    %85 = vector.load %arg16[%c0_47, %c0_48] : memref<1x128xf32, #tpu.memory_space<vmem>>, vector<1x128xf32>
    %cst_49 = arith.constant dense<0.000000e+00> : vector<128xf32>
    %86 = vector.multi_reduction <add>, %82, %cst_49 [0] : vector<32x128xf32> to vector<128xf32>
    %87 = vector.shape_cast %86 : vector<128xf32> to vector<1x128xf32>
    %88 = arith.mulf %82, %82 : vector<32x128xf32>
    %cst_50 = arith.constant dense<0.000000e+00> : vector<128xf32>
    %89 = vector.multi_reduction <add>, %88, %cst_50 [0] : vector<32x128xf32> to vector<128xf32>
    %90 = vector.shape_cast %89 : vector<128xf32> to vector<1x128xf32>
    %91 = tpu.concatenate %87, %90 in 0 : vector<1x128xf32>, vector<1x128xf32> -> vector<2x128xf32>
    %cst_51 = arith.constant dense<0.000000e+00> : vector<2x128xf32>
    %92 = tpu.matmul %91, %83, %cst_51 {dimension_numbers = #tpu.dot_dimension_numbers<[1], [0], [0], [1], [0, 0, 1, 1], [], []>} : vector<2x128xf32>, vector<128x128xf32>, vector<2x128xf32> -> vector<2x128xf32>
    %93 = vector.extract_strided_slice %92 {offsets = [0, 0], sizes = [1, 128], strides = [1, 1]} : vector<2x128xf32> to vector<1x128xf32>
    %94 = vector.extract_strided_slice %92 {offsets = [1, 0], sizes = [1, 128], strides = [1, 1]} : vector<2x128xf32> to vector<1x128xf32>
    %95 = arith.mulf %93, %93 : vector<1x128xf32>
    %96 = arith.subf %94, %95 : vector<1x128xf32>
    %cst_52 = arith.constant 0.000000e+00 : f32
    %97 = vector.broadcast %cst_52 : f32 to vector<1x128xf32>
    %98 = arith.maximumf %96, %97 : vector<1x128xf32>
    %cst_53 = arith.constant 9.99999974E-6 : f32
    %99 = vector.broadcast %cst_53 : f32 to vector<1x128xf32>
    %100 = arith.addf %98, %99 : vector<1x128xf32>
    %101 = math.rsqrt %100 : vector<1x128xf32>
    %102 = arith.mulf %84, %101 : vector<1x128xf32>
    %103 = arith.mulf %93, %102 : vector<1x128xf32>
    %104 = arith.subf %85, %103 : vector<1x128xf32>
    %105 = vector.broadcast %102 : vector<1x128xf32> to vector<32x128xf32>
    %106 = arith.mulf %82, %105 : vector<32x128xf32>
    %107 = vector.broadcast %104 : vector<1x128xf32> to vector<32x128xf32>
    %108 = arith.addf %106, %107 : vector<32x128xf32>
    %cst_54 = arith.constant 0.000000e+00 : f32
    %109 = vector.broadcast %cst_54 : f32 to vector<32x128xf32>
    %110 = arith.maximumf %108, %109 : vector<32x128xf32>
    %111 = arith.truncf %110 : vector<32x128xf32> to vector<32x128xbf16>
    %c0_55 = arith.constant 0 : index
    %c0_56 = arith.constant 0 : index
    %112 = vector.load %arg17[%c0_55, %c0_56] : memref<128x512xbf16, #tpu.memory_space<vmem>>, vector<128x512xbf16>
    %c0_57 = arith.constant 0 : index
    %c0_58 = arith.constant 0 : index
    %113 = vector.load %arg18[%c0_57, %c0_58] : memref<64x128xbf16, #tpu.memory_space<vmem>>, vector<64x128xbf16>
    %c0_59 = arith.constant 0 : index
    %c0_60 = arith.constant 0 : index
    %114 = vector.load %arg19[%c0_59, %c0_60] : memref<1x128xf32, #tpu.memory_space<vmem>>, vector<1x128xf32>
    %cst_61 = arith.constant dense<0.000000e+00> : vector<32x512xf32>
    %115 = tpu.matmul %111, %112, %cst_61 {dimension_numbers = #tpu.dot_dimension_numbers<[1], [0], [0], [1], [0, 0, 1, 1], [], []>} : vector<32x128xbf16>, vector<128x512xbf16>, vector<32x512xf32> -> vector<32x512xf32>
    %116 = vector.extract_strided_slice %115 {offsets = [0, 0], sizes = [32, 128], strides = [1, 1]} : vector<32x512xf32> to vector<32x128xf32>
    %117 = vector.extract_strided_slice %115 {offsets = [0, 128], sizes = [32, 128], strides = [1, 1]} : vector<32x512xf32> to vector<32x128xf32>
    %118 = vector.extract_strided_slice %115 {offsets = [0, 256], sizes = [32, 128], strides = [1, 1]} : vector<32x512xf32> to vector<32x128xf32>
    %119 = vector.extract_strided_slice %115 {offsets = [0, 384], sizes = [32, 128], strides = [1, 1]} : vector<32x512xf32> to vector<32x128xf32>
    %120 = tpu.concatenate %116, %117, %118, %119 in 0 : vector<32x128xf32>, vector<32x128xf32>, vector<32x128xf32>, vector<32x128xf32> -> vector<128x128xf32>
    %121 = arith.truncf %120 : vector<128x128xf32> to vector<128x128xbf16>
    %cst_62 = arith.constant dense<0.000000e+00> : vector<64x128xf32>
    %122 = tpu.matmul %113, %121, %cst_62 {dimension_numbers = #tpu.dot_dimension_numbers<[1], [0], [0], [1], [0, 0, 1, 1], [], []>} : vector<64x128xbf16>, vector<128x128xbf16>, vector<64x128xf32> -> vector<64x128xf32>
    %123 = vector.broadcast %114 : vector<1x128xf32> to vector<64x128xf32>
    %124 = arith.addf %122, %123 : vector<64x128xf32>
    %c0_63 = arith.constant 0 : index
    %c0_64 = arith.constant 0 : index
    %125 = vector.load %arg20[%c0_63, %c0_64] : memref<128x128xf32, #tpu.memory_space<vmem>>, vector<128x128xf32>
    %c0_65 = arith.constant 0 : index
    %c0_66 = arith.constant 0 : index
    %126 = vector.load %arg21[%c0_65, %c0_66] : memref<1x128xf32, #tpu.memory_space<vmem>>, vector<1x128xf32>
    %c0_67 = arith.constant 0 : index
    %c0_68 = arith.constant 0 : index
    %127 = vector.load %arg22[%c0_67, %c0_68] : memref<1x128xf32, #tpu.memory_space<vmem>>, vector<1x128xf32>
    %cst_69 = arith.constant dense<0.000000e+00> : vector<128xf32>
    %128 = vector.multi_reduction <add>, %124, %cst_69 [0] : vector<64x128xf32> to vector<128xf32>
    %129 = vector.shape_cast %128 : vector<128xf32> to vector<1x128xf32>
    %130 = arith.mulf %124, %124 : vector<64x128xf32>
    %cst_70 = arith.constant dense<0.000000e+00> : vector<128xf32>
    %131 = vector.multi_reduction <add>, %130, %cst_70 [0] : vector<64x128xf32> to vector<128xf32>
    %132 = vector.shape_cast %131 : vector<128xf32> to vector<1x128xf32>
    %133 = tpu.concatenate %129, %132 in 0 : vector<1x128xf32>, vector<1x128xf32> -> vector<2x128xf32>
    %cst_71 = arith.constant dense<0.000000e+00> : vector<2x128xf32>
    %134 = tpu.matmul %133, %125, %cst_71 {dimension_numbers = #tpu.dot_dimension_numbers<[1], [0], [0], [1], [0, 0, 1, 1], [], []>} : vector<2x128xf32>, vector<128x128xf32>, vector<2x128xf32> -> vector<2x128xf32>
    %135 = vector.extract_strided_slice %134 {offsets = [0, 0], sizes = [1, 128], strides = [1, 1]} : vector<2x128xf32> to vector<1x128xf32>
    %136 = vector.extract_strided_slice %134 {offsets = [1, 0], sizes = [1, 128], strides = [1, 1]} : vector<2x128xf32> to vector<1x128xf32>
    %137 = arith.mulf %135, %135 : vector<1x128xf32>
    %138 = arith.subf %136, %137 : vector<1x128xf32>
    %cst_72 = arith.constant 0.000000e+00 : f32
    %139 = vector.broadcast %cst_72 : f32 to vector<1x128xf32>
    %140 = arith.maximumf %138, %139 : vector<1x128xf32>
    %cst_73 = arith.constant 9.99999974E-6 : f32
    %141 = vector.broadcast %cst_73 : f32 to vector<1x128xf32>
    %142 = arith.addf %140, %141 : vector<1x128xf32>
    %143 = math.rsqrt %142 : vector<1x128xf32>
    %144 = arith.mulf %126, %143 : vector<1x128xf32>
    %145 = arith.mulf %135, %144 : vector<1x128xf32>
    %146 = arith.subf %127, %145 : vector<1x128xf32>
    %147 = vector.broadcast %144 : vector<1x128xf32> to vector<64x128xf32>
    %148 = arith.mulf %124, %147 : vector<64x128xf32>
    %149 = vector.broadcast %146 : vector<1x128xf32> to vector<64x128xf32>
    %150 = arith.addf %148, %149 : vector<64x128xf32>
    %cst_74 = arith.constant 0.000000e+00 : f32
    %151 = vector.broadcast %cst_74 : f32 to vector<64x128xf32>
    %152 = arith.maximumf %150, %151 : vector<64x128xf32>
    %153 = arith.truncf %152 : vector<64x128xf32> to vector<64x128xbf16>
    %c0_75 = arith.constant 0 : index
    %c0_76 = arith.constant 0 : index
    %154 = vector.load %arg23[%c0_75, %c0_76] : memref<128x384xbf16, #tpu.memory_space<vmem>>, vector<128x384xbf16>
    %c0_77 = arith.constant 0 : index
    %c0_78 = arith.constant 0 : index
    %155 = vector.load %arg24[%c0_77, %c0_78] : memref<64x192xbf16, #tpu.memory_space<vmem>>, vector<64x192xbf16>
    %c0_79 = arith.constant 0 : index
    %c0_80 = arith.constant 0 : index
    %156 = vector.load %arg25[%c0_79, %c0_80] : memref<1x128xf32, #tpu.memory_space<vmem>>, vector<1x128xf32>
    %cst_81 = arith.constant dense<0.000000e+00> : vector<64x384xf32>
    %157 = tpu.matmul %153, %154, %cst_81 {dimension_numbers = #tpu.dot_dimension_numbers<[1], [0], [0], [1], [0, 0, 1, 1], [], []>} : vector<64x128xbf16>, vector<128x384xbf16>, vector<64x384xf32> -> vector<64x384xf32>
    %158 = vector.extract_strided_slice %157 {offsets = [0, 0], sizes = [64, 128], strides = [1, 1]} : vector<64x384xf32> to vector<64x128xf32>
    %159 = vector.extract_strided_slice %157 {offsets = [0, 128], sizes = [64, 128], strides = [1, 1]} : vector<64x384xf32> to vector<64x128xf32>
    %160 = vector.extract_strided_slice %157 {offsets = [0, 256], sizes = [64, 128], strides = [1, 1]} : vector<64x384xf32> to vector<64x128xf32>
    %161 = tpu.concatenate %158, %159, %160 in 0 : vector<64x128xf32>, vector<64x128xf32>, vector<64x128xf32> -> vector<192x128xf32>
    %162 = arith.truncf %161 : vector<192x128xf32> to vector<192x128xbf16>
    %cst_82 = arith.constant dense<0.000000e+00> : vector<64x128xf32>
    %163 = tpu.matmul %155, %162, %cst_82 {dimension_numbers = #tpu.dot_dimension_numbers<[1], [0], [0], [1], [0, 0, 1, 1], [], []>} : vector<64x192xbf16>, vector<192x128xbf16>, vector<64x128xf32> -> vector<64x128xf32>
    %164 = vector.broadcast %156 : vector<1x128xf32> to vector<64x128xf32>
    %165 = arith.addf %163, %164 : vector<64x128xf32>
    %c0_83 = arith.constant 0 : index
    %c0_84 = arith.constant 0 : index
    %166 = vector.load %arg26[%c0_83, %c0_84] : memref<64x128xf32, #tpu.memory_space<vmem>>, vector<64x128xf32>
    tpu.vector_store %arg26[%c0_83, %c0_84], %165 {strides = array<i32>} : memref<64x128xf32, #tpu.memory_space<vmem>>, vector<64x128xf32>,
    return
  }
}

</mosaic_0001>

<llo_original>
// kernel: apply.1
$region0: #{apply.1}
  #allocation0 [shape = 'u32[]', space=smem, size = 0x4, offset = 0x4, fixed_abs, tag = 'smem constant byte address 0x4 - core index']
  #allocation1 [shape = 'u32[144,128]{1,0:T(1,128)}', space=vmem, size = 0x12000, scoped, tag = 'internal scratch']
  %s0 = inlined_call_operand.vmem [shape: f32[16,16], index: 0, kind: input, shape index: {}]
  %s1 = inlined_call_operand.hbm [shape: f32[16,256], index: 1, kind: input, shape index: {}]
  %s2 = inlined_call_operand.hbm [shape: f32[1,256], index: 2, kind: input, shape index: {}]
  %s3 = inlined_call_operand.hbm [shape: f32[1,256], index: 3, kind: input, shape index: {}]
  %s4 = inlined_call_operand.vmem [shape: f32[1,256], index: 4, kind: input, shape index: {}]
  %s5 = inlined_call_operand.hbm [shape: f32[16,256], index: 5, kind: input, shape index: {}]
  %s6 = inlined_call_operand.hbm [shape: bf16[256,128], index: 6, kind: input, shape index: {}]
  %s7 = inlined_call_operand.hbm [shape: f32[16,128], index: 7, kind: input, shape index: {}]
  %s8 = inlined_call_operand.hbm [shape: f32[128,128], index: 8, kind: input, shape index: {}]
  %s9 = inlined_call_operand.hbm [shape: f32[1,128], index: 9, kind: input, shape index: {}]
  %s10 = inlined_call_operand.hbm [shape: f32[1,128], index: 10, kind: input, shape index: {}]
  %s11 = inlined_call_operand.hbm [shape: bf16[128,512], index: 11, kind: input, shape index: {}]
  %s12 = inlined_call_operand.vmem [shape: bf16[32,64], index: 12, kind: input, shape index: {}]
  %s13 = inlined_call_operand.hbm [shape: f32[1,128], index: 13, kind: input, shape index: {}]
  %s14 = inlined_call_operand.hbm [shape: f32[128,128], index: 14, kind: input, shape index: {}]
  %s15 = inlined_call_operand.hbm [shape: f32[1,128], index: 15, kind: input, shape index: {}]
  %s16 = inlined_call_operand.hbm [shape: f32[1,128], index: 16, kind: input, shape index: {}]
  %s17 = inlined_call_operand.hbm [shape: bf16[128,512], index: 17, kind: input, shape index: {}]
  %s18 = inlined_call_operand.vmem [shape: bf16[64,128], index: 18, kind: input, shape index: {}]
  %s19 = inlined_call_operand.hbm [shape: f32[1,128], index: 19, kind: input, shape index: {}]
  %s20 = inlined_call_operand.hbm [shape: f32[128,128], index: 20, kind: input, shape index: {}]
  %s21 = inlined_call_operand.vmem [shape: f32[1,128], index: 21, kind: input, shape index: {}]
  %s22 = inlined_call_operand.vmem [shape: f32[1,128], index: 22, kind: input, shape index: {}]
  %s23 = inlined_call_operand.hbm [shape: bf16[128,384], index: 23, kind: input, shape index: {}]
  %s24 = inlined_call_operand.hbm [shape: bf16[64,192], index: 24, kind: input, shape index: {}]
  %s25 = inlined_call_operand.vmem [shape: f32[1,128], index: 25, kind: input, shape index: {}]
  %s26 = inlined_call_operand.vmem [shape: f32[64,128], index: 26, kind: output, shape index: {}]
  %s27 = sld [smem:[#allocation0]]
  $region190: #{apply.1} parent=0
    _
  %s29 = ssub.s32 1, %s27
  %s30 = scalar_select 0, %s29, %s27
  $region1: #{apply.1} parent=0
    #allocation2 [shape = 'u8[16384]{0}', space=vmem, size = 0x4000, scoped, tag = 'input window, operand 1, single buffered']
    #allocation3 [shape = 's32[1]{0}', space=sflag, size = 0x4, scoped, tag = 'scoped memory for apply.1']
    #allocation4 [shape = 'u8[1024]{0}', space=vmem, size = 0x400, scoped, tag = 'input window, operand 2, single buffered']
    #allocation5 [shape = 's32[1]{0}', space=sflag, size = 0x4, scoped, tag = 'scoped memory for apply.1']
    #allocation6 [shape = 'u8[1024]{0}', space=vmem, size = 0x400, scoped, tag = 'input window, operand 3, single buffered']
    #allocation7 [shape = 'u8[16384]{0}', space=vmem, size = 0x4000, scoped, tag = 'input window, operand 5, single buffered']
    #allocation8 [shape = 's32[1]{0}', space=sflag, size = 0x4, scoped, tag = 'scoped memory for apply.1']
    #allocation9 [shape = 'u8[65536]{0}', space=vmem, size = 0x10000, scoped, tag = 'input window, operand 6, single buffered']
    #allocation10 [shape = 'u8[8192]{0}', space=vmem, size = 0x2000, scoped, tag = 'input window, operand 7, single buffered']
    #allocation11 [shape = 's32[1]{0}', space=sflag, size = 0x4, scoped, tag = 'scoped memory for apply.1']
    #allocation12 [shape = 'u8[65536]{0}', space=vmem, size = 0x10000, scoped, tag = 'input window, operand 8, single buffered']
    #allocation13 [shape = 'u8[512]{0}', space=vmem, size = 0x400, scoped, tag = 'input window, operand 9, single buffered']
    #allocation14 [shape = 's32[1]{0}', space=sflag, size = 0x4, scoped, tag = 'scoped memory for apply.1']
    #allocation15 [shape = 'u8[512]{0}', space=vmem, size = 0x400, scoped, tag = 'input window, operand 10, single buffered']
    #allocation16 [shape = 'u8[131072]{0}', space=vmem, size = 0x20000, scoped, tag = 'input window, operand 11, single buffered']
    #allocation17 [shape = 's32[1]{0}', space=sflag, size = 0x4, scoped, tag = 'scoped memory for apply.1']
    #allocation18 [shape = 'u8[512]{0}', space=vmem, size = 0x400, scoped, tag = 'input window, operand 13, single buffered']
    #allocation19 [shape = 'u8[65536]{0}', space=vmem, size = 0x10000, scoped, tag = 'input window, operand 14, single buffered']
    #allocation20 [shape = 's32[1]{0}', space=sflag, size = 0x4, scoped, tag = 'scoped memory for apply.1']
    #allocation21 [shape = 'u8[512]{0}', space=vmem, size = 0x400, scoped, tag = 'input window, operand 15, single buffered']
    #allocation22 [shape = 'u8[512]{0}', space=vmem, size = 0x400, scoped, tag = 'input window, operand 16, single buffered']
    #allocation23 [shape = 's32[1]{0}', space=sflag, size = 0x4, scoped, tag = 'scoped memory for apply.1']
    #allocation24 [shape = 'u8[131072]{0}', space=vmem, size = 0x20000, scoped, tag = 'input window, operand 17, single buffered']
    #allocation25 [shape = 'u8[512]{0}', space=vmem, size = 0x400, scoped, tag = 'input window, operand 19, single buffered']
    #allocation26 [shape = 's32[1]{0}', space=sflag, size = 0x4, scoped, tag = 'scoped memory for apply.1']
    #allocation27 [shape = 'u8[65536]{0}', space=vmem, size = 0x10000, scoped, tag = 'input window, operand 20, single buffered']
    #allocation28 [shape = 'u8[98304]{0}', space=vmem, size = 0x18000, scoped, tag = 'input window, operand 23, single buffered']
    #allocation29 [shape = 's32[1]{0}', space=sflag, size = 0x4, scoped, tag = 'scoped memory for apply.1']
    #allocation30 [shape = 'u8[32768]{0}', space=vmem, size = 0x8000, scoped, tag = 'input window, operand 24, single buffered']
    %31 = vsyncpa [#allocation3], 0
    %32 = vsyncpa [#allocation5], 0
    %33 = vsyncpa [#allocation8], 0
    %34 = vsyncpa [#allocation11], 0
    %35 = vsyncpa [#allocation14], 0
    %36 = vsyncpa [#allocation17], 0
    %37 = vsyncpa [#allocation20], 0
    %38 = vsyncpa [#allocation23], 0
    %39 = vsyncpa [#allocation26], 0
    %40 = vsyncpa [#allocation29], 0
    // Predicated region
    $region2: #{apply.1} parent=1 // pred_check
      _
    $region3: #{apply.1} parent=1 // pred_check_branch
      %42 = sbr.rel (0) target = $region5
    $region4: #{apply.1} parent=1 // pred_region
      _
    $region5: #{apply.1} parent=1 // pred_fallthru
      _
    // Predicated region
    $region6: #{apply.1} parent=1 // pred_check
      _
    $region7: #{apply.1} parent=1 // pred_check_branch
      %44 = sbr.rel (0) target = $region9
    $region8: #{apply.1} parent=1 // pred_region
      %s46 = ssub.s32 512, 512
      %47 = vsyncadd [#allocation3], %s46
      %s48 = sshll.u32 [#allocation2], 4
      %s49 = int_to_ptr.vmem [resolvable:$true] %s48
      %54 = dma.hbm_to_vmem [thread:$0]  %s1, 512, %s49, [#allocation3], 256, 256, 16
    $region9: #{apply.1} parent=1 // pred_fallthru
      _
    // Predicated region
    $region10: #{apply.1} parent=1 // pred_check
      _
    $region11: #{apply.1} parent=1 // pred_check_branch
      %56 = sbr.rel (0) target = $region13
    $region12: #{apply.1} parent=1 // pred_region
      %s58 = ssub.s32 32, 32
      %59 = vsyncadd [#allocation5], %s58
      %s61 = sshll.u32 [#allocation4], 4
      %s62 = int_to_ptr.vmem [resolvable:$true] %s61
      %64 = dma.hbm_to_vmem [thread:$0]  %s2, 32, %s62, [#allocation5]
    $region13: #{apply.1} parent=1 // pred_fallthru
      _
    // Predicated region
    $region14: #{apply.1} parent=1 // pred_check
      _
    $region15: #{apply.1} parent=1 // pred_check_branch
      %66 = sbr.rel (0) target = $region17
    $region16: #{apply.1} parent=1 // pred_region
      %s68 = ssub.s32 32, 32
      %69 = vsyncadd [#allocation5], %s68
      %s71 = sshll.u32 [#allocation6], 4
      %s72 = int_to_ptr.vmem [resolvable:$true] %s71
      %74 = dma.hbm_to_vmem [thread:$0]  %s3, 32, %s72, [#allocation5]
    $region17: #{apply.1} parent=1 // pred_fallthru
      _
    // Predicated region
    $region18: #{apply.1} parent=1 // pred_check
      _
    $region19: #{apply.1} parent=1 // pred_check_branch
      %76 = sbr.rel (0) target = $region21
    $region20: #{apply.1} parent=1 // pred_region
      _
    $region21: #{apply.1} parent=1 // pred_fallthru
      _
    // Predicated region
    $region22: #{apply.1} parent=1 // pred_check
      _
    $region23: #{apply.1} parent=1 // pred_check_branch
      %78 = sbr.rel (0) target = $region25
    $region24: #{apply.1} parent=1 // pred_region
      %s80 = ssub.s32 512, 512
      %81 = vsyncadd [#allocation8], %s80
      %s82 = sshll.u32 [#allocation7], 4
      %s83 = int_to_ptr.vmem [resolvable:$true] %s82
      %88 = dma.hbm_to_vmem [thread:$0]  %s5, 512, %s83, [#allocation8], 256, 256, 16
    $region25: #{apply.1} parent=1 // pred_fallthru
      _
    // Predicated region
    $region26: #{apply.1} parent=1 // pred_check
      _
    $region27: #{apply.1} parent=1 // pred_check_branch
      %90 = sbr.rel (0) target = $region29
    $region28: #{apply.1} parent=1 // pred_region
      %s92 = ssub.s32 2048, 2048
      %93 = vsyncadd [#allocation8], %s92
      %s94 = sshll.u32 [#allocation9], 4
      %s95 = int_to_ptr.vmem [resolvable:$true] %s94
      %100 = dma.hbm_to_vmem [thread:$0]  %s6, 2048, %s95, [#allocation8], 64, 64, 4
    $region29: #{apply.1} parent=1 // pred_fallthru
      _
    // Predicated region
    $region30: #{apply.1} parent=1 // pred_check
      _
    $region31: #{apply.1} parent=1 // pred_check_branch
      %102 = sbr.rel (0) target = $region33
    $region32: #{apply.1} parent=1 // pred_region
      %s104 = ssub.s32 256, 256
      %105 = vsyncadd [#allocation11], %s104
      %s106 = sshll.u32 [#allocation10], 4
      %s107 = int_to_ptr.vmem [resolvable:$true] %s106
      %112 = dma.hbm_to_vmem [thread:$0]  %s7, 256, %s107, [#allocation11], 128, 128, 8
    $region33: #{apply.1} parent=1 // pred_fallthru
      _
    // Predicated region
    $region34: #{apply.1} parent=1 // pred_check
      _
    $region35: #{apply.1} parent=1 // pred_check_branch
      %114 = sbr.rel (0) target = $region37
    $region36: #{apply.1} parent=1 // pred_region
      %s116 = ssub.s32 2048, 2048
      %117 = vsyncadd [#allocation11], %s116
      %s118 = sshll.u32 [#allocation12], 4
      %s119 = int_to_ptr.vmem [resolvable:$true] %s118
      %124 = dma.hbm_to_vmem [thread:$0]  %s8, 2048, %s119, [#allocation11], 128, 128, 8
    $region37: #{apply.1} parent=1 // pred_fallthru
      _
    // Predicated region
    $region38: #{apply.1} parent=1 // pred_check
      _
    $region39: #{apply.1} parent=1 // pred_check_branch
      %126 = sbr.rel (0) target = $region41
    $region40: #{apply.1} parent=1 // pred_region
      %s128 = ssub.s32 16, 16
      %129 = vsyncadd [#allocation14], %s128
      %s131 = sshll.u32 [#allocation13], 4
      %s132 = int_to_ptr.vmem [resolvable:$true] %s131
      %134 = dma.hbm_to_vmem [thread:$0]  %s9, 16, %s132, [#allocation14]
    $region41: #{apply.1} parent=1 // pred_fallthru
      _
    // Predicated region
    $region42: #{apply.1} parent=1 // pred_check
      _
    $region43: #{apply.1} parent=1 // pred_check_branch
      %136 = sbr.rel (0) target = $region45
    $region44: #{apply.1} parent=1 // pred_region
      %s138 = ssub.s32 16, 16
      %139 = vsyncadd [#allocation14], %s138
      %s141 = sshll.u32 [#allocation15], 4
      %s142 = int_to_ptr.vmem [resolvable:$true] %s141
      %144 = dma.hbm_to_vmem [thread:$0]  %s10, 16, %s142, [#allocation14]
    $region45: #{apply.1} parent=1 // pred_fallthru
      _
    // Predicated region
    $region46: #{apply.1} parent=1 // pred_check
      _
    $region47: #{apply.1} parent=1 // pred_check_branch
      %146 = sbr.rel (0) target = $region49
    $region48: #{apply.1} parent=1 // pred_region
      %s148 = ssub.s32 4096, 4096
      %149 = vsyncadd [#allocation17], %s148
      %s150 = sshll.u32 [#allocation16], 4
      %s151 = int_to_ptr.vmem [resolvable:$true] %s150
      %156 = dma.hbm_to_vmem [thread:$0]  %s11, 4096, %s151, [#allocation17], 256, 256, 16
    $region49: #{apply.1} parent=1 // pred_fallthru
      _
    // Predicated region
    $region50: #{apply.1} parent=1 // pred_check
      _
    $region51: #{apply.1} parent=1 // pred_check_branch
      %158 = sbr.rel (0) target = $region53
    $region52: #{apply.1} parent=1 // pred_region
      _
    $region53: #{apply.1} parent=1 // pred_fallthru
      _
    // Predicated region
    $region54: #{apply.1} parent=1 // pred_check
      _
    $region55: #{apply.1} parent=1 // pred_check_branch
      %160 = sbr.rel (0) target = $region57
    $region56: #{apply.1} parent=1 // pred_region
      %s162 = ssub.s32 16, 16
      %163 = vsyncadd [#allocation17], %s162
      %s165 = sshll.u32 [#allocation18], 4
      %s166 = int_to_ptr.vmem [resolvable:$true] %s165
      %168 = dma.hbm_to_vmem [thread:$0]  %s13, 16, %s166, [#allocation17]
    $region57: #{apply.1} parent=1 // pred_fallthru
      _
    // Predicated region
    $region58: #{apply.1} parent=1 // pred_check
      _
    $region59: #{apply.1} parent=1 // pred_check_branch
      %170 = sbr.rel (0) target = $region61
    $region60: #{apply.1} parent=1 // pred_region
      %s172 = ssub.s32 2048, 2048
      %173 = vsyncadd [#allocation20], %s172
      %s174 = sshll.u32 [#allocation19], 4
      %s175 = int_to_ptr.vmem [resolvable:$true] %s174
      %180 = dma.hbm_to_vmem [thread:$0]  %s14, 2048, %s175, [#allocation20], 128, 128, 8
    $region61: #{apply.1} parent=1 // pred_fallthru
      _
    // Predicated region
    $region62: #{apply.1} parent=1 // pred_check
      _
    $region63: #{apply.1} parent=1 // pred_check_branch
      %182 = sbr.rel (0) target = $region65
    $region64: #{apply.1} parent=1 // pred_region
      %s184 = ssub.s32 16, 16
      %185 = vsyncadd [#allocation20], %s184
      %s187 = sshll.u32 [#allocation21], 4
      %s188 = int_to_ptr.vmem [resolvable:$true] %s187
      %190 = dma.hbm_to_vmem [thread:$0]  %s15, 16, %s188, [#allocation20]
    $region65: #{apply.1} parent=1 // pred_fallthru
      _
    // Predicated region
    $region66: #{apply.1} parent=1 // pred_check
      _
    $region67: #{apply.1} parent=1 // pred_check_branch
      %192 = sbr.rel (0) target = $region69
    $region68: #{apply.1} parent=1 // pred_region
      %s194 = ssub.s32 16, 16
      %195 = vsyncadd [#allocation23], %s194
      %s197 = sshll.u32 [#allocation22], 4
      %s198 = int_to_ptr.vmem [resolvable:$true] %s197
      %200 = dma.hbm_to_vmem [thread:$0]  %s16, 16, %s198, [#allocation23]
    $region69: #{apply.1} parent=1 // pred_fallthru
      _
    // Predicated region
    $region70: #{apply.1} parent=1 // pred_check
      _
    $region71: #{apply.1} parent=1 // pred_check_branch
      %202 = sbr.rel (0) target = $region73
    $region72: #{apply.1} parent=1 // pred_region
      %s204 = ssub.s32 4096, 4096
      %205 = vsyncadd [#allocation23], %s204
      %s206 = sshll.u32 [#allocation24], 4
      %s207 = int_to_ptr.vmem [resolvable:$true] %s206
      %212 = dma.hbm_to_vmem [thread:$0]  %s17, 4096, %s207, [#allocation23], 256, 256, 16
    $region73: #{apply.1} parent=1 // pred_fallthru
      _
    // Predicated region
    $region74: #{apply.1} parent=1 // pred_check
      _
    $region75: #{apply.1} parent=1 // pred_check_branch
      %214 = sbr.rel (0) target = $region77
    $region76: #{apply.1} parent=1 // pred_region
      _
    $region77: #{apply.1} parent=1 // pred_fallthru
      _
    // Predicated region
    $region78: #{apply.1} parent=1 // pred_check
      _
    $region79: #{apply.1} parent=1 // pred_check_branch
      %216 = sbr.rel (0) target = $region81
    $region80: #{apply.1} parent=1 // pred_region
      %s218 = ssub.s32 16, 16
      %219 = vsyncadd [#allocation26], %s218
      %s221 = sshll.u32 [#allocation25], 4
      %s222 = int_to_ptr.vmem [resolvable:$true] %s221
      %224 = dma.hbm_to_vmem [thread:$0]  %s19, 16, %s222, [#allocation26]
    $region81: #{apply.1} parent=1 // pred_fallthru
      _
    // Predicated region
    $region82: #{apply.1} parent=1 // pred_check
      _
    $region83: #{apply.1} parent=1 // pred_check_branch
      %226 = sbr.rel (0) target = $region85
    $region84: #{apply.1} parent=1 // pred_region
      %s228 = ssub.s32 2048, 2048
      %229 = vsyncadd [#allocation26], %s228
      %s230 = sshll.u32 [#allocation27], 4
      %s231 = int_to_ptr.vmem [resolvable:$true] %s230
      %236 = dma.hbm_to_vmem [thread:$0]  %s20, 2048, %s231, [#allocation26], 128, 128, 8
    $region85: #{apply.1} parent=1 // pred_fallthru
      _
    // Predicated region
    $region86: #{apply.1} parent=1 // pred_check
      _
    $region87: #{apply.1} parent=1 // pred_check_branch
      %238 = sbr.rel (0) target = $region89
    $region88: #{apply.1} parent=1 // pred_region
      _
    $region89: #{apply.1} parent=1 // pred_fallthru
      _
    // Predicated region
    $region90: #{apply.1} parent=1 // pred_check
      _
    $region91: #{apply.1} parent=1 // pred_check_branch
      %240 = sbr.rel (0) target = $region93
    $region92: #{apply.1} parent=1 // pred_region
      _
    $region93: #{apply.1} parent=1 // pred_fallthru
      _
    // Predicated region
    $region94: #{apply.1} parent=1 // pred_check
      _
    $region95: #{apply.1} parent=1 // pred_check_branch
      %242 = sbr.rel (0) target = $region97
    $region96: #{apply.1} parent=1 // pred_region
      %s244 = ssub.s32 3072, 3072
      %245 = vsyncadd [#allocation29], %s244
      %s246 = sshll.u32 [#allocation28], 4
      %s247 = int_to_ptr.vmem [resolvable:$true] %s246
      %252 = dma.hbm_to_vmem [thread:$0]  %s23, 3072, %s247, [#allocation29], 192, 192, 12
    $region97: #{apply.1} parent=1 // pred_fallthru
      _
    // Predicated region
    $region98: #{apply.1} parent=1 // pred_check
      _
    $region99: #{apply.1} parent=1 // pred_check_branch
      %254 = sbr.rel (0) target = $region101
    $region100: #{apply.1} parent=1 // pred_region
      %s256 = ssub.s32 1024, 1024
      %257 = vsyncadd [#allocation29], %s256
      %s258 = sshll.u32 [#allocation30], 4
      %s259 = int_to_ptr.vmem [resolvable:$true] %s258
      %264 = dma.hbm_to_vmem [thread:$0]  %s24, 1024, %s259, [#allocation29], 128, 128, 8
    $region101: #{apply.1} parent=1 // pred_fallthru
      _
    // Predicated region
    $region102: #{apply.1} parent=1 // pred_check
      _
    $region103: #{apply.1} parent=1 // pred_check_branch
      %266 = sbr.rel (0) target = $region105
    $region104: #{apply.1} parent=1 // pred_region
      _
    $region105: #{apply.1} parent=1 // pred_fallthru
      _
    // Predicated region
    $region106: #{apply.1} parent=1 // pred_check
      _
    $region107: #{apply.1} parent=1 // pred_check_branch
      %268 = sbr.rel (0) target = $region109
    $region108: #{apply.1} parent=1 // pred_region
      %269 = dma.done [#allocation3], 512
    $region109: #{apply.1} parent=1 // pred_fallthru
      _
    // Predicated region
    $region110: #{apply.1} parent=1 // pred_check
      _
    $region111: #{apply.1} parent=1 // pred_check_branch
      %271 = sbr.rel (0) target = $region113
    $region112: #{apply.1} parent=1 // pred_region
      %272 = dma.done [#allocation5], 32
    $region113: #{apply.1} parent=1 // pred_fallthru
      _
    // Predicated region
    $region114: #{apply.1} parent=1 // pred_check
      _
    $region115: #{apply.1} parent=1 // pred_check_branch
      %274 = sbr.rel (0) target = $region117
    $region116: #{apply.1} parent=1 // pred_region
      %275 = dma.done [#allocation5], 32
    $region117: #{apply.1} parent=1 // pred_fallthru
      _
    // Predicated region
    $region118: #{apply.1} parent=1 // pred_check
      _
    $region119: #{apply.1} parent=1 // pred_check_branch
      %277 = sbr.rel (0) target = $region121
    $region120: #{apply.1} parent=1 // pred_region
      %278 = dma.done [#allocation8], 512
    $region121: #{apply.1} parent=1 // pred_fallthru
      _
    // Predicated region
    $region122: #{apply.1} parent=1 // pred_check
      _
    $region123: #{apply.1} parent=1 // pred_check_branch
      %280 = sbr.rel (0) target = $region125
    $region124: #{apply.1} parent=1 // pred_region
      %281 = dma.done [#allocation8], 2048
    $region125: #{apply.1} parent=1 // pred_fallthru
      _
    // Predicated region
    $region126: #{apply.1} parent=1 // pred_check
      _
    $region127: #{apply.1} parent=1 // pred_check_branch
      %283 = sbr.rel (0) target = $region129
    $region128: #{apply.1} parent=1 // pred_region
      %284 = dma.done [#allocation11], 256
    $region129: #{apply.1} parent=1 // pred_fallthru
      _
    // Predicated region
    $region130: #{apply.1} parent=1 // pred_check
      _
    $region131: #{apply.1} parent=1 // pred_check_branch
      %286 = sbr.rel (0) target = $region133
    $region132: #{apply.1} parent=1 // pred_region
      %287 = dma.done [#allocation11], 2048
    $region133: #{apply.1} parent=1 // pred_fallthru
      _
    // Predicated region
    $region134: #{apply.1} parent=1 // pred_check
      _
    $region135: #{apply.1} parent=1 // pred_check_branch
      %289 = sbr.rel (0) target = $region137
    $region136: #{apply.1} parent=1 // pred_region
      %290 = dma.done [#allocation14], 16
    $region137: #{apply.1} parent=1 // pred_fallthru
      _
    // Predicated region
    $region138: #{apply.1} parent=1 // pred_check
      _
    $region139: #{apply.1} parent=1 // pred_check_branch
      %292 = sbr.rel (0) target = $region141
    $region140: #{apply.1} parent=1 // pred_region
      %293 = dma.done [#allocation14], 16
    $region141: #{apply.1} parent=1 // pred_fallthru
      _
    // Predicated region
    $region142: #{apply.1} parent=1 // pred_check
      _
    $region143: #{apply.1} parent=1 // pred_check_branch
      %295 = sbr.rel (0) target = $region145
    $region144: #{apply.1} parent=1 // pred_region
      %296 = dma.done [#allocation17], 4096
    $region145: #{apply.1} parent=1 // pred_fallthru
      _
    // Predicated region
    $region146: #{apply.1} parent=1 // pred_check
      _
    $region147: #{apply.1} parent=1 // pred_check_branch
      %298 = sbr.rel (0) target = $region149
    $region148: #{apply.1} parent=1 // pred_region
      %299 = dma.done [#allocation17], 16
    $region149: #{apply.1} parent=1 // pred_fallthru
      _
    // Predicated region
    $region150: #{apply.1} parent=1 // pred_check
      _
    $region151: #{apply.1} parent=1 // pred_check_branch
      %301 = sbr.rel (0) target = $region153
    $region152: #{apply.1} parent=1 // pred_region
      %302 = dma.done [#allocation20], 2048
    $region153: #{apply.1} parent=1 // pred_fallthru
      _
    // Predicated region
    $region154: #{apply.1} parent=1 // pred_check
      _
    $region155: #{apply.1} parent=1 // pred_check_branch
      %304 = sbr.rel (0) target = $region157
    $region156: #{apply.1} parent=1 // pred_region
      %305 = dma.done [#allocation20], 16
    $region157: #{apply.1} parent=1 // pred_fallthru
      _
    // Predicated region
    $region158: #{apply.1} parent=1 // pred_check
      _
    $region159: #{apply.1} parent=1 // pred_check_branch
      %307 = sbr.rel (0) target = $region161
    $region160: #{apply.1} parent=1 // pred_region
      %308 = dma.done [#allocation23], 16
    $region161: #{apply.1} parent=1 // pred_fallthru
      _
    // Predicated region
    $region162: #{apply.1} parent=1 // pred_check
      _
    $region163: #{apply.1} parent=1 // pred_check_branch
      %310 = sbr.rel (0) target = $region165
    $region164: #{apply.1} parent=1 // pred_region
      %311 = dma.done [#allocation23], 4096
    $region165: #{apply.1} parent=1 // pred_fallthru
      _
    // Predicated region
    $region166: #{apply.1} parent=1 // pred_check
      _
    $region167: #{apply.1} parent=1 // pred_check_branch
      %313 = sbr.rel (0) target = $region169
    $region168: #{apply.1} parent=1 // pred_region
      %314 = dma.done [#allocation26], 16
    $region169: #{apply.1} parent=1 // pred_fallthru
      _
    // Predicated region
    $region170: #{apply.1} parent=1 // pred_check
      _
    $region171: #{apply.1} parent=1 // pred_check_branch
      %316 = sbr.rel (0) target = $region173
    $region172: #{apply.1} parent=1 // pred_region
      %317 = dma.done [#allocation26], 2048
    $region173: #{apply.1} parent=1 // pred_fallthru
      _
    // Predicated region
    $region174: #{apply.1} parent=1 // pred_check
      _
    $region175: #{apply.1} parent=1 // pred_check_branch
      %319 = sbr.rel (0) target = $region177
    $region176: #{apply.1} parent=1 // pred_region
      %320 = dma.done [#allocation29], 3072
    $region177: #{apply.1} parent=1 // pred_fallthru
      _
    // Predicated region
    $region178: #{apply.1} parent=1 // pred_check
      _
    $region179: #{apply.1} parent=1 // pred_check_branch
      %322 = sbr.rel (0) target = $region181
    $region180: #{apply.1} parent=1 // pred_region
      %323 = dma.done [#allocation29], 1024
    $region181: #{apply.1} parent=1 // pred_fallthru
      _
    %v325 = vld [vmem:[%s0] sm:$0xff]
    %v326 = vld [vmem:[%s0 + $0x8] sm:$0xff]
    %v327 = vld [vmem:[#allocation2] sm:$0xff]
    %v328 = vld [vmem:[#allocation2 + $0x8] sm:$0xff]
    %v329 = vld [vmem:[#allocation2 + $0x10] sm:$0xff]
    %v330 = vld [vmem:[#allocation2 + $0x18] sm:$0xff]
    %v331 = vld [vmem:[#allocation4] sm:$0x3]
    %v333 = vlaneseq
    %v334 = vshrl.u32 %v333, 7
    %v335 = vsub.s32 0, %v334
    %v336 = vrot.slane %v331, %v335
    %v337 = vlaneseq
    %v338 = vshrl.u32 %v337, 7
    %v339 = vsub.s32 1, %v338
    %v340 = vrot.slane %v331, %v339
    %vm343 = vcmask 130048
    %v345 = vsel %vm343, %v325, 0
    %v348 = vsel %vm343, %v326, 0
    %350 = vmatprep.subr.mxu0 0.0
    %351 = vmatpush1.msra.mxu0 0.0
    %352 = vmatprep.subr.mxu0 0.0
    %353 = vmatpush1.msra.mxu0 0.0
    %354 = vmatprep.subr.mxu0 0.0
    %355 = vmatpush1.msra.mxu0 0.0
    %356 = vmatprep.subr.mxu0 0.0
    %357 = vmatpush1.msra.mxu0 0.0
    %358 = vmatprep.subr.mxu0 0.0
    %359 = vmatpush1.msra.mxu0 0.0
    %360 = vmatprep.subr.mxu0 0.0
    %361 = vmatpush1.msra.mxu0 0.0
    %362 = vmatprep.subr.mxu0 0.0
    %363 = vmatpush1.msra.mxu0 0.0
    %364 = vmatprep.subr.mxu0 0.0
    %365 = vmatpush1.msra.mxu0 0.0
    %366 = vmatprep.subr.mxu0 0.0
    %367 = vmatpush1.msra.mxu0 0.0
    %368 = vmatprep.subr.mxu0 0.0
    %369 = vmatpush1.msra.mxu0 0.0
    %370 = vmatprep.subr.mxu0 0.0
    %371 = vmatpush1.msra.mxu0 0.0
    %372 = vmatprep.subr.mxu0 0.0
    %373 = vmatpush1.msra.mxu0 0.0
    %374 = vmatprep.subr.mxu0 0.0
    %375 = vmatpush1.msra.mxu0 0.0
    %376 = vmatprep.subr.mxu0 0.0
    %377 = vmatpush1.msra.mxu0 0.0
    %378 = vmatprep.subr.mxu0 %v330
    %379 = vmatpush1.msra.mxu0 %v329
    %380 = vmatprep.subr.mxu0 %v328
    %381 = vmatpush1.msra.mxu0 %v327
    %382 = vmatprep.subr.mxu0 0.0
    %383 = vmatpush2.msra.mxu0 0.0
    %384 = vmatprep.subr.mxu0 0.0
    %385 = vmatpush2.msra.mxu0 0.0
    %386 = vmatprep.subr.mxu0 0.0
    %387 = vmatpush2.msra.mxu0 0.0
    %388 = vmatprep.subr.mxu0 0.0
    %389 = vmatpush2.msra.mxu0 0.0
    %390 = vmatprep.subr.mxu0 0.0
    %391 = vmatpush2.msra.mxu0 0.0
    %392 = vmatprep.subr.mxu0 0.0
    %393 = vmatpush2.msra.mxu0 0.0
    %394 = vmatprep.subr.mxu0 0.0
    %395 = vmatpush2.msra.mxu0 0.0
    %396 = vmatprep.subr.mxu0 0.0
    %397 = vmatpush2.msra.mxu0 0.0
    %398 = vmatprep.subr.mxu0 0.0
    %399 = vmatpush2.msra.mxu0 0.0
    %400 = vmatprep.subr.mxu0 0.0
    %401 = vmatpush2.msra.mxu0 0.0
    %402 = vmatprep.subr.mxu0 0.0
    %403 = vmatpush2.msra.mxu0 0.0
    %404 = vmatprep.subr.mxu0 0.0
    %405 = vmatpush2.msra.mxu0 0.0
    %406 = vmatprep.subr.mxu0 0.0
    %407 = vmatpush2.msra.mxu0 0.0
    %408 = vmatprep.subr.mxu0 0.0
    %409 = vmatpush2.msra.mxu0 0.0
    %410 = vmatprep.subr.mxu0 0.0
    %411 = vmatpush2.msra.mxu0 0.0
    %412 = vmatprep.subr.mxu0 0.0
    %413 = vmatpush2.msra.mxu0 0.0
    %414 = vmatprep.mubr.f32.mxu0 0.0
    %415 = vmatmul.mubr.f32.gmra.mxu0 %v345
    %v416 = vpop.f32.mrf.mxu0
    %v417 = vadd.f32 %v336, %v416
    %v418 = vpop.f32.mrf.mxu0
    %v419 = vadd.f32 %v340, %v418
    %420 = vmatprep.mubr.f32.mxu0 0.0
    %421 = vmatmul.mubr.f32.gmra.mxu0 %v348
    %v422 = vpop.f32.mrf.mxu0
    %v423 = vadd.f32 %v336, %v422
    %v424 = vpop.f32.mrf.mxu0
    %v425 = vadd.f32 %v340, %v424
    %426 = vdwg.mxu0
    %v427 = vadd.f32 %v417, %v423
    %v428 = vrot.slane %v427, 4
    %v429 = vadd.f32 %v427, %v428
    %v430 = vrot.slane %v429, 2
    %v431 = vadd.f32 %v429, %v430
    %v432 = vrot.slane %v431, 1
    %v433 = vadd.f32 %v431, %v432
    %v434 = vadd.f32 %v419, %v425
    %v435 = vrot.slane %v434, 4
    %v436 = vadd.f32 %v434, %v435
    %v437 = vrot.slane %v436, 2
    %v438 = vadd.f32 %v436, %v437
    %v439 = vrot.slane %v438, 1
    %v440 = vadd.f32 %v438, %v439
    %v441 = vrcp.pop 16.0
    %v442 = vmul.f32 %v433, %v441
    %v443 = vmul.f32 %v440, %v441
    %v444 = vmul.f32 %v417, %v417
    %v445 = vmul.f32 %v419, %v419
    %v446 = vmul.f32 %v423, %v423
    %v447 = vmul.f32 %v425, %v425
    %v448 = vadd.f32 %v444, %v446
    %v449 = vrot.slane %v448, 4
    %v450 = vadd.f32 %v448, %v449
    %v451 = vrot.slane %v450, 2
    %v452 = vadd.f32 %v450, %v451
    %v453 = vrot.slane %v452, 1
    %v454 = vadd.f32 %v452, %v453
    %v455 = vadd.f32 %v445, %v447
    %v456 = vrot.slane %v455, 4
    %v457 = vadd.f32 %v455, %v456
    %v458 = vrot.slane %v457, 2
    %v459 = vadd.f32 %v457, %v458
    %v460 = vrot.slane %v459, 1
    %v461 = vadd.f32 %v459, %v460
    %v462 = vmul.f32 %v454, %v441
    %v463 = vmul.f32 %v461, %v441
    %v464 = vmul.f32 %v442, %v442
    %v465 = vmul.f32 %v443, %v443
    %v466 = vsub.f32 %v462, %v464
    %v467 = vsub.f32 %v463, %v465
    %v468 = vmax.f32 %v466, 0.0
    %v469 = vmax.f32 %v467, 0.0
    %v470 = vsub.f32 %v417, %v442
    %v471 = vsub.f32 %v419, %v443
    %v472 = vsub.f32 %v423, %v442
    %v473 = vsub.f32 %v425, %v443
    %v474 = vadd.f32 %v468, 1e-05
    %v475 = vadd.f32 %v469, 1e-05
    %v476 = vrsqrt.pop %v474
    %v477 = vrsqrt.pop %v475
    %v478 = vmul.f32 %v470, %v476
    %v479 = vmul.f32 %v471, %v477
    %v480 = vmul.f32 %v472, %v476
    %v481 = vmul.f32 %v473, %v477
    %v482 = vld [vmem:[#allocation6] sm:$0x3]
    %v484 = vlaneseq
    %v485 = vshrl.u32 %v484, 7
    %v486 = vsub.s32 0, %v485
    %v487 = vrot.slane %v482, %v486
    %v488 = vlaneseq
    %v489 = vshrl.u32 %v488, 7
    %v490 = vsub.s32 1, %v489
    %v491 = vrot.slane %v482, %v490
    %v494 = vmul.f32 %v478, %v487
    %v495 = vmul.f32 %v479, %v491
    %v496 = vmul.f32 %v480, %v487
    %v497 = vmul.f32 %v481, %v491
    %v498 = vld [vmem:[%s4] sm:$0x3]
    %v500 = vlaneseq
    %v501 = vshrl.u32 %v500, 7
    %v502 = vsub.s32 0, %v501
    %v503 = vrot.slane %v498, %v502
    %v504 = vlaneseq
    %v505 = vshrl.u32 %v504, 7
    %v506 = vsub.s32 1, %v505
    %v507 = vrot.slane %v498, %v506
    %v510 = vadd.f32 %v494, %v503
    %v511 = vadd.f32 %v495, %v507
    %v512 = vadd.f32 %v496, %v503
    %v513 = vadd.f32 %v497, %v507
    %v514 = vmax.f32 %v510, 0.0
    %v515 = vmax.f32 %v511, 0.0
    %v516 = vmax.f32 %v512, 0.0
    %v517 = vmax.f32 %v513, 0.0
    %v518 = vld [vmem:[#allocation7] sm:$0xff]
    %v519 = vld [vmem:[#allocation7 + $0x8] sm:$0xff]
    %v520 = vld [vmem:[#allocation7 + $0x10] sm:$0xff]
    %v521 = vld [vmem:[#allocation7 + $0x18] sm:$0xff]
    %v522 = vmul.f32 %v514, %v518
    %v523 = vmul.f32 %v515, %v519
    %v524 = vmul.f32 %v516, %v520
    %v525 = vmul.f32 %v517, %v521
    %v526 = vpack.c.bf16 %v524, %v522
    %v527 = vpack.c.bf16 %v525, %v523
    %v528 = vld [vmem:[#allocation9] sm:$0xf]
    %v529 = vld [vmem:[#allocation9 + $0x4] sm:$0xf]
    %v530 = vld [vmem:[#allocation9 + $0x8] sm:$0xf]
    %v531 = vld [vmem:[#allocation9 + $0xc] sm:$0xf]
    %v532 = vld [vmem:[#allocation9 + $0x10] sm:$0xf]
    %v533 = vld [vmem:[#allocation9 + $0x14] sm:$0xf]
    %v534 = vld [vmem:[#allocation9 + $0x18] sm:$0xf]
    %v535 = vld [vmem:[#allocation9 + $0x1c] sm:$0xf]
    %v536 = vld [vmem:[#allocation9 + $0x20] sm:$0xf]
    %v537 = vld [vmem:[#allocation9 + $0x24] sm:$0xf]
    %v538 = vld [vmem:[#allocation9 + $0x28] sm:$0xf]
    %v539 = vld [vmem:[#allocation9 + $0x2c] sm:$0xf]
    %v540 = vld [vmem:[#allocation9 + $0x30] sm:$0xf]
    %v541 = vld [vmem:[#allocation9 + $0x34] sm:$0xf]
    %v542 = vld [vmem:[#allocation9 + $0x38] sm:$0xf]
    %v543 = vld [vmem:[#allocation9 + $0x3c] sm:$0xf]
    %v544 = vld [vmem:[#allocation9 + $0x40] sm:$0xf]
    %v545 = vld [vmem:[#allocation9 + $0x44] sm:$0xf]
    %v546 = vld [vmem:[#allocation9 + $0x48] sm:$0xf]
    %v547 = vld [vmem:[#allocation9 + $0x4c] sm:$0xf]
    %v548 = vld [vmem:[#allocation9 + $0x50] sm:$0xf]
    %v549 = vld [vmem:[#allocation9 + $0x54] sm:$0xf]
    %v550 = vld [vmem:[#allocation9 + $0x58] sm:$0xf]
    %v551 = vld [vmem:[#allocation9 + $0x5c] sm:$0xf]
    %v552 = vld [vmem:[#allocation9 + $0x60] sm:$0xf]
    %v553 = vld [vmem:[#allocation9 + $0x64] sm:$0xf]
    %v554 = vld [vmem:[#allocation9 + $0x68] sm:$0xf]
    %v555 = vld [vmem:[#allocation9 + $0x6c] sm:$0xf]
    %v556 = vld [vmem:[#allocation9 + $0x70] sm:$0xf]
    %v557 = vld [vmem:[#allocation9 + $0x74] sm:$0xf]
    %v558 = vld [vmem:[#allocation9 + $0x78] sm:$0xf]
    %v559 = vld [vmem:[#allocation9 + $0x7c] sm:$0xf]
    %v560 = vld [vmem:[#allocation10] sm:$0xff]
    %v561 = vld [vmem:[#allocation10 + $0x8] sm:$0xff]
    %v594 = vunpack.c.l.b16 %v528
    %v595 = vunpack.c.l.b16 %v529
    %v596 = vunpack.c.l.b16 %v530
    %v597 = vunpack.c.l.b16 %v531
    %v598 = vunpack.c.l.b16 %v532
    %v599 = vunpack.c.l.b16 %v533
    %v600 = vunpack.c.l.b16 %v534
    %v601 = vunpack.c.l.b16 %v535
    %v602 = vunpack.c.l.b16 %v536
    %v603 = vunpack.c.l.b16 %v537
    %v604 = vunpack.c.l.b16 %v538
    %v605 = vunpack.c.l.b16 %v539
    %v606 = vunpack.c.l.b16 %v540
    %v607 = vunpack.c.l.b16 %v541
    %v608 = vunpack.c.l.b16 %v542
    %v609 = vunpack.c.l.b16 %v543
    %v610 = vunpack.c.l.b16 %v544
    %v611 = vunpack.c.l.b16 %v545
    %v612 = vunpack.c.l.b16 %v546
    %v613 = vunpack.c.l.b16 %v547
    %v614 = vunpack.c.l.b16 %v548
    %v615 = vunpack.c.l.b16 %v549
    %v616 = vunpack.c.l.b16 %v550
    %v617 = vunpack.c.l.b16 %v551
    %v618 = vunpack.c.l.b16 %v552
    %v619 = vunpack.c.l.b16 %v553
    %v620 = vunpack.c.l.b16 %v554
    %v621 = vunpack.c.l.b16 %v555
    %v622 = vunpack.c.l.b16 %v556
    %v623 = vunpack.c.l.b16 %v557
    %v624 = vunpack.c.l.b16 %v558
    %v625 = vunpack.c.l.b16 %v559
    %v626 = vpack.c.b16 %v595, %v594
    %v627 = vpack.c.b16 %v597, %v596
    %v628 = vpack.c.b16 %v599, %v598
    %v629 = vpack.c.b16 %v601, %v600
    %v630 = vpack.c.b16 %v603, %v602
    %v631 = vpack.c.b16 %v605, %v604
    %v632 = vpack.c.b16 %v607, %v606
    %v633 = vpack.c.b16 %v609, %v608
    %v634 = vpack.c.b16 %v611, %v610
    %v635 = vpack.c.b16 %v613, %v612
    %v636 = vpack.c.b16 %v615, %v614
    %v637 = vpack.c.b16 %v617, %v616
    %v638 = vpack.c.b16 %v619, %v618
    %v639 = vpack.c.b16 %v621, %v620
    %v640 = vpack.c.b16 %v623, %v622
    %v641 = vpack.c.b16 %v625, %v624
    %658 = vmatprep.subr.bf16.mxu0 0
    %659 = vmatpush1.bf16.msra.mxu0 %v633
    %660 = vmatprep.subr.bf16.mxu0 0
    %661 = vmatpush1.bf16.msra.mxu0 %v632
    %662 = vmatprep.subr.bf16.mxu0 0
    %663 = vmatpush1.bf16.msra.mxu0 %v631
    %664 = vmatprep.subr.bf16.mxu0 0
    %665 = vmatpush1.bf16.msra.mxu0 %v630
    %666 = vmatprep.subr.bf16.mxu0 0
    %667 = vmatpush1.bf16.msra.mxu0 %v629
    %668 = vmatprep.subr.bf16.mxu0 0
    %669 = vmatpush1.bf16.msra.mxu0 %v628
    %670 = vmatprep.subr.bf16.mxu0 0
    %671 = vmatpush1.bf16.msra.mxu0 %v627
    %672 = vmatprep.subr.bf16.mxu0 0
    %673 = vmatpush1.bf16.msra.mxu0 %v626
    %674 = vmatprep.subr.bf16.mxu0 0
    %675 = vmatpush2.bf16.msra.mxu0 %v641
    %676 = vmatprep.subr.bf16.mxu0 0
    %677 = vmatpush2.bf16.msra.mxu0 %v640
    %678 = vmatprep.subr.bf16.mxu0 0
    %679 = vmatpush2.bf16.msra.mxu0 %v639
    %680 = vmatprep.subr.bf16.mxu0 0
    %681 = vmatpush2.bf16.msra.mxu0 %v638
    %682 = vmatprep.subr.bf16.mxu0 0
    %683 = vmatpush2.bf16.msra.mxu0 %v637
    %684 = vmatprep.subr.bf16.mxu0 0
    %685 = vmatpush2.bf16.msra.mxu0 %v636
    %686 = vmatprep.subr.bf16.mxu0 0
    %687 = vmatpush2.bf16.msra.mxu0 %v635
    %688 = vmatprep.subr.bf16.mxu0 0
    %689 = vmatpush2.bf16.msra.mxu0 %v634
    %690 = vmatprep.mubr.bf16.mxu0 %v527
    %691 = vmatmul.mubr.bf16.gmra.mxu0 %v526
    %v692 = vpop.f32.mrf.mxu0
    %v693 = vadd.f32 %v560, %v692
    %v694 = vpop.f32.mrf.mxu0
    %v695 = vpop.f32.mrf.mxu0
    %v696 = vadd.f32 %v561, %v695
    %v697 = vpop.f32.mrf.mxu0
    %698 = vdwg.mxu0
    %v699 = vld [vmem:[#allocation12] sm:$0xff]
    %v700 = vld [vmem:[#allocation12 + $0x8] sm:$0xff]
    %v701 = vld [vmem:[#allocation12 + $0x10] sm:$0xff]
    %v702 = vld [vmem:[#allocation12 + $0x18] sm:$0xff]
    %v703 = vld [vmem:[#allocation12 + $0x20] sm:$0xff]
    %v704 = vld [vmem:[#allocation12 + $0x28] sm:$0xff]
    %v705 = vld [vmem:[#allocation12 + $0x30] sm:$0xff]
    %v706 = vld [vmem:[#allocation12 + $0x38] sm:$0xff]
    %v707 = vld [vmem:[#allocation12 + $0x40] sm:$0xff]
    %v708 = vld [vmem:[#allocation12 + $0x48] sm:$0xff]
    %v709 = vld [vmem:[#allocation12 + $0x50] sm:$0xff]
    %v710 = vld [vmem:[#allocation12 + $0x58] sm:$0xff]
    %v711 = vld [vmem:[#allocation12 + $0x60] sm:$0xff]
    %v712 = vld [vmem:[#allocation12 + $0x68] sm:$0xff]
    %v713 = vld [vmem:[#allocation12 + $0x70] sm:$0xff]
    %v714 = vld [vmem:[#allocation12 + $0x78] sm:$0xff]
    %v715 = vld [vmem:[#allocation13] sm:$0x1]
    %v716 = vld [vmem:[#allocation15] sm:$0x1]
    %v717 = vadd.f32 %v693, %v696
    %v718 = vrot.slane %v717, 4
    %v719 = vadd.f32 %v717, %v718
    %v720 = vrot.slane %v719, 2
    %v721 = vadd.f32 %v719, %v720
    %v722 = vrot.slane %v721, 1
    %v723 = vadd.f32 %v721, %v722
    %v724 = vmul.f32 %v693, %v693
    %v725 = vmul.f32 %v696, %v696
    %v726 = vadd.f32 %v724, %v725
    %v727 = vrot.slane %v726, 4
    %v728 = vadd.f32 %v726, %v727
    %v729 = vrot.slane %v728, 2
    %v730 = vadd.f32 %v728, %v729
    %v731 = vrot.slane %v730, 1
    %v732 = vadd.f32 %v730, %v731
    %vm733 = vcmask 1040384
    %v734 = vsel %vm733, %v723, %v732
    %735 = vmatprep.subr.mxu0 0.0
    %736 = vmatpush1.msra.mxu0 %v714
    %737 = vmatprep.subr.mxu0 0.0
    %738 = vmatpush1.msra.mxu0 %v713
    %739 = vmatprep.subr.mxu0 0.0
    %740 = vmatpush1.msra.mxu0 %v712
    %741 = vmatprep.subr.mxu0 0.0
    %742 = vmatpush1.msra.mxu0 %v711
    %743 = vmatprep.subr.mxu0 0.0
    %744 = vmatpush1.msra.mxu0 %v710
    %745 = vmatprep.subr.mxu0 0.0
    %746 = vmatpush1.msra.mxu0 %v709
    %747 = vmatprep.subr.mxu0 0.0
    %748 = vmatpush1.msra.mxu0 %v708
    %749 = vmatprep.subr.mxu0 0.0
    %750 = vmatpush1.msra.mxu0 %v707
    %751 = vmatprep.subr.mxu0 0.0
    %752 = vmatpush1.msra.mxu0 %v706
    %753 = vmatprep.subr.mxu0 0.0
    %754 = vmatpush1.msra.mxu0 %v705
    %755 = vmatprep.subr.mxu0 0.0
    %756 = vmatpush1.msra.mxu0 %v704
    %757 = vmatprep.subr.mxu0 0.0
    %758 = vmatpush1.msra.mxu0 %v703
    %759 = vmatprep.subr.mxu0 0.0
    %760 = vmatpush1.msra.mxu0 %v702
    %761 = vmatprep.subr.mxu0 0.0
    %762 = vmatpush1.msra.mxu0 %v701
    %763 = vmatprep.subr.mxu0 0.0
    %764 = vmatpush1.msra.mxu0 %v700
    %765 = vmatprep.subr.mxu0 0.0
    %766 = vmatpush1.msra.mxu0 %v699
    %767 = vmatprep.subr.mxu0 0.0
    %768 = vmatpush2.msra.mxu0 0.0
    %769 = vmatprep.subr.mxu0 0.0
    %770 = vmatpush2.msra.mxu0 0.0
    %771 = vmatprep.subr.mxu0 0.0
    %772 = vmatpush2.msra.mxu0 0.0
    %773 = vmatprep.subr.mxu0 0.0
    %774 = vmatpush2.msra.mxu0 0.0
    %775 = vmatprep.subr.mxu0 0.0
    %776 = vmatpush2.msra.mxu0 0.0
    %777 = vmatprep.subr.mxu0 0.0
    %778 = vmatpush2.msra.mxu0 0.0
    %779 = vmatprep.subr.mxu0 0.0
    %780 = vmatpush2.msra.mxu0 0.0
    %781 = vmatprep.subr.mxu0 0.0
    %782 = vmatpush2.msra.mxu0 0.0
    %783 = vmatprep.subr.mxu0 0.0
    %784 = vmatpush2.msra.mxu0 0.0
    %785 = vmatprep.subr.mxu0 0.0
    %786 = vmatpush2.msra.mxu0 0.0
    %787 = vmatprep.subr.mxu0 0.0
    %788 = vmatpush2.msra.mxu0 0.0
    %789 = vmatprep.subr.mxu0 0.0
    %790 = vmatpush2.msra.mxu0 0.0
    %791 = vmatprep.subr.mxu0 0.0
    %792 = vmatpush2.msra.mxu0 0.0
    %793 = vmatprep.subr.mxu0 0.0
    %794 = vmatpush2.msra.mxu0 0.0
    %795 = vmatprep.subr.mxu0 0.0
    %796 = vmatpush2.msra.mxu0 0.0
    %797 = vmatprep.subr.mxu0 0.0
    %798 = vmatpush2.msra.mxu0 0.0
    %799 = vmatprep.mubr.f32.mxu0 0.0
    %800 = vmatmul.mubr.f32.gmra.mxu0 %v734
    %v801 = vpop.f32.mrf.mxu0
    %v802 = vadd.f32 0.0, %v801
    %v803 = vpop.f32.mrf.mxu0
    %804 = vdwg.mxu0
    %v805 = vmul.f32 %v802, %v802
    %v807 = vrot.slane %v805, 7
    %v809 = vsub.f32 %v802, %v807
    %v810 = vmax.f32 %v809, 0.0
    %v811 = vadd.f32 %v810, 1e-05
    %v812 = vrsqrt.pop %v811
    %v815 = vunpack.c.l.s4 1966171168
    %v816 = vunpack.c.0.s8 %v815
    %v817 = vlaneseq
    %v818 = vshrl.u32 %v817, 7
    %v819 = vsub.s32 %v816, %v818
    %v820 = vrot.slane %v812, %v819
    %v821 = vcombine.high %v820, %v820
    %v823 = vunpack.c.l.s4 1966171168
    %v824 = vunpack.c.0.s8 %v823
    %v825 = vlaneseq
    %v826 = vshrl.u32 %v825, 7
    %v827 = vsub.s32 %v824, %v826
    %v828 = vrot.slane %v821, %v827
    %v830 = vmul.f32 %v715, %v828
    %v831 = vmul.f32 %v802, %v830
    %v832 = vsub.f32 %v716, %v831
    %v834 = vlaneseq
    %v835 = vshrl.u32 %v834, 7
    %v836 = vsub.s32 0, %v835
    %v837 = vrot.slane %v830, %v836
    %v839 = vmul.f32 %v693, %v837
    %v840 = vmul.f32 %v696, %v837
    %v842 = vlaneseq
    %v843 = vshrl.u32 %v842, 7
    %v844 = vsub.s32 0, %v843
    %v845 = vrot.slane %v832, %v844
    %v847 = vadd.f32 %v839, %v845
    %v848 = vadd.f32 %v840, %v845
    %v849 = vmax.f32 %v847, 0.0
    %v850 = vmax.f32 %v848, 0.0
    %v851 = vpack.c.bf16 %v850, %v849
    %v852 = vld [vmem:[#allocation16] sm:$0xff]
    %v853 = vld [vmem:[#allocation16 + $0x8] sm:$0xff]
    %v854 = vld [vmem:[#allocation16 + $0x10] sm:$0xff]
    %v855 = vld [vmem:[#allocation16 + $0x18] sm:$0xff]
    %v856 = vld [vmem:[#allocation16 + $0x20] sm:$0xff]
    %v857 = vld [vmem:[#allocation16 + $0x28] sm:$0xff]
    %v858 = vld [vmem:[#allocation16 + $0x30] sm:$0xff]
    %v859 = vld [vmem:[#allocation16 + $0x38] sm:$0xff]
    %v860 = vld [vmem:[#allocation16 + $0x40] sm:$0xff]
    %v861 = vld [vmem:[#allocation16 + $0x48] sm:$0xff]
    %v862 = vld [vmem:[#allocation16 + $0x50] sm:$0xff]
    %v863 = vld [vmem:[#allocation16 + $0x58] sm:$0xff]
    %v864 = vld [vmem:[#allocation16 + $0x60] sm:$0xff]
    %v865 = vld [vmem:[#allocation16 + $0x68] sm:$0xff]
    %v866 = vld [vmem:[#allocation16 + $0x70] sm:$0xff]
    %v867 = vld [vmem:[#allocation16 + $0x78] sm:$0xff]
    %v868 = vld [vmem:[#allocation16 + $0x80] sm:$0xff]
    %v869 = vld [vmem:[#allocation16 + $0x88] sm:$0xff]
    %v870 = vld [vmem:[#allocation16 + $0x90] sm:$0xff]
    %v871 = vld [vmem:[#allocation16 + $0x98] sm:$0xff]
    %v872 = vld [vmem:[#allocation16 + $0xa0] sm:$0xff]
    %v873 = vld [vmem:[#allocation16 + $0xa8] sm:$0xff]
    %v874 = vld [vmem:[#allocation16 + $0xb0] sm:$0xff]
    %v875 = vld [vmem:[#allocation16 + $0xb8] sm:$0xff]
    %v876 = vld [vmem:[#allocation16 + $0xc0] sm:$0xff]
    %v877 = vld [vmem:[#allocation16 + $0xc8] sm:$0xff]
    %v878 = vld [vmem:[#allocation16 + $0xd0] sm:$0xff]
    %v879 = vld [vmem:[#allocation16 + $0xd8] sm:$0xff]
    %v880 = vld [vmem:[#allocation16 + $0xe0] sm:$0xff]
    %v881 = vld [vmem:[#allocation16 + $0xe8] sm:$0xff]
    %v882 = vld [vmem:[#allocation16 + $0xf0] sm:$0xff]
    %v883 = vld [vmem:[#allocation16 + $0xf8] sm:$0xff]
    %v884 = vld [vmem:[%s12] sm:$0xf]
    %v885 = vld [vmem:[%s12 + $0x4] sm:$0xf]
    %v886 = vld [vmem:[%s12 + $0x8] sm:$0xf]
    %v887 = vld [vmem:[%s12 + $0xc] sm:$0xf]
    %v888 = vld [vmem:[#allocation18] sm:$0x1]
    %v921 = vunpack.c.l.b16 %v852
    %v922 = vunpack.c.h.b16 %v852
    %v923 = vunpack.c.l.b16 %v853
    %v924 = vunpack.c.h.b16 %v853
    %v925 = vunpack.c.l.b16 %v854
    %v926 = vunpack.c.h.b16 %v854
    %v927 = vunpack.c.l.b16 %v855
    %v928 = vunpack.c.h.b16 %v855
    %v929 = vunpack.c.l.b16 %v856
    %v930 = vunpack.c.h.b16 %v856
    %v931 = vunpack.c.l.b16 %v857
    %v932 = vunpack.c.h.b16 %v857
    %v933 = vunpack.c.l.b16 %v858
    %v934 = vunpack.c.h.b16 %v858
    %v935 = vunpack.c.l.b16 %v859
    %v936 = vunpack.c.h.b16 %v859
    %v937 = vunpack.c.l.b16 %v860
    %v938 = vunpack.c.h.b16 %v860
    %v939 = vunpack.c.l.b16 %v861
    %v940 = vunpack.c.h.b16 %v861
    %v941 = vunpack.c.l.b16 %v862
    %v942 = vunpack.c.h.b16 %v862
    %v943 = vunpack.c.l.b16 %v863
    %v944 = vunpack.c.h.b16 %v863
    %v945 = vunpack.c.l.b16 %v864
    %v946 = vunpack.c.h.b16 %v864
    %v947 = vunpack.c.l.b16 %v865
    %v948 = vunpack.c.h.b16 %v865
    %v949 = vunpack.c.l.b16 %v866
    %v950 = vunpack.c.h.b16 %v866
    %v951 = vunpack.c.l.b16 %v867
    %v952 = vunpack.c.h.b16 %v867
    %v953 = vunpack.c.l.b16 %v868
    %v954 = vunpack.c.h.b16 %v868
    %v955 = vunpack.c.l.b16 %v869
    %v956 = vunpack.c.h.b16 %v869
    %v957 = vunpack.c.l.b16 %v870
    %v958 = vunpack.c.h.b16 %v870
    %v959 = vunpack.c.l.b16 %v871
    %v960 = vunpack.c.h.b16 %v871
    %v961 = vunpack.c.l.b16 %v872
    %v962 = vunpack.c.h.b16 %v872
    %v963 = vunpack.c.l.b16 %v873
    %v964 = vunpack.c.h.b16 %v873
    %v965 = vunpack.c.l.b16 %v874
    %v966 = vunpack.c.h.b16 %v874
    %v967 = vunpack.c.l.b16 %v875
    %v968 = vunpack.c.h.b16 %v875
    %v969 = vunpack.c.l.b16 %v876
    %v970 = vunpack.c.h.b16 %v876
    %v971 = vunpack.c.l.b16 %v877
    %v972 = vunpack.c.h.b16 %v877
    %v973 = vunpack.c.l.b16 %v878
    %v974 = vunpack.c.h.b16 %v878
    %v975 = vunpack.c.l.b16 %v879
    %v976 = vunpack.c.h.b16 %v879
    %v977 = vunpack.c.l.b16 %v880
    %v978 = vunpack.c.h.b16 %v880
    %v979 = vunpack.c.l.b16 %v881
    %v980 = vunpack.c.h.b16 %v881
    %v981 = vunpack.c.l.b16 %v882
    %v982 = vunpack.c.h.b16 %v882
    %v983 = vunpack.c.l.b16 %v883
    %v984 = vunpack.c.h.b16 %v883
    %v985 = vpack.c.b16 %v925, %v921
    %v986 = vpack.c.b16 %v926, %v922
    %v987 = vpack.c.b16 %v927, %v923
    %v988 = vpack.c.b16 %v928, %v924
    %v989 = vpack.c.b16 %v933, %v929
    %v990 = vpack.c.b16 %v934, %v930
    %v991 = vpack.c.b16 %v935, %v931
    %v992 = vpack.c.b16 %v936, %v932
    %v993 = vpack.c.b16 %v941, %v937
    %v994 = vpack.c.b16 %v942, %v938
    %v995 = vpack.c.b16 %v943, %v939
    %v996 = vpack.c.b16 %v944, %v940
    %v997 = vpack.c.b16 %v949, %v945
    %v998 = vpack.c.b16 %v950, %v946
    %v999 = vpack.c.b16 %v951, %v947
    %v1000 = vpack.c.b16 %v952, %v948
    %v1001 = vpack.c.b16 %v957, %v953
    %v1002 = vpack.c.b16 %v958, %v954
    %v1003 = vpack.c.b16 %v959, %v955
    %v1004 = vpack.c.b16 %v960, %v956
    %v1005 = vpack.c.b16 %v965, %v961
    %v1006 = vpack.c.b16 %v966, %v962
    %v1007 = vpack.c.b16 %v967, %v963
    %v1008 = vpack.c.b16 %v968, %v964
    %v1009 = vpack.c.b16 %v973, %v969
    %v1010 = vpack.c.b16 %v974, %v970
    %v1011 = vpack.c.b16 %v975, %v971
    %v1012 = vpack.c.b16 %v976, %v972
    %v1013 = vpack.c.b16 %v981, %v977
    %v1014 = vpack.c.b16 %v982, %v978
    %v1015 = vpack.c.b16 %v983, %v979
    %v1016 = vpack.c.b16 %v984, %v980
    %1049 = vmatprep.subr.bf16.mxu0 %v1014
    %1050 = vmatpush1.bf16.msra.mxu0 %v1013
    %1051 = vmatprep.subr.bf16.mxu0 %v1010
    %1052 = vmatpush1.bf16.msra.mxu0 %v1009
    %1053 = vmatprep.subr.bf16.mxu0 %v1006
    %1054 = vmatpush1.bf16.msra.mxu0 %v1005
    %1055 = vmatprep.subr.bf16.mxu0 %v1002
    %1056 = vmatpush1.bf16.msra.mxu0 %v1001
    %1057 = vmatprep.subr.bf16.mxu0 %v998
    %1058 = vmatpush1.bf16.msra.mxu0 %v997
    %1059 = vmatprep.subr.bf16.mxu0 %v994
    %1060 = vmatpush1.bf16.msra.mxu0 %v993
    %1061 = vmatprep.subr.bf16.mxu0 %v990
    %1062 = vmatpush1.bf16.msra.mxu0 %v989
    %1063 = vmatprep.subr.bf16.mxu0 %v986
    %1064 = vmatpush1.bf16.msra.mxu0 %v985
    %1065 = vmatprep.subr.bf16.mxu0 0
    %1066 = vmatpush2.bf16.msra.mxu0 0
    %1067 = vmatprep.subr.bf16.mxu0 0
    %1068 = vmatpush2.bf16.msra.mxu0 0
    %1069 = vmatprep.subr.bf16.mxu0 0
    %1070 = vmatpush2.bf16.msra.mxu0 0
    %1071 = vmatprep.subr.bf16.mxu0 0
    %1072 = vmatpush2.bf16.msra.mxu0 0
    %1073 = vmatprep.subr.bf16.mxu0 0
    %1074 = vmatpush2.bf16.msra.mxu0 0
    %1075 = vmatprep.subr.bf16.mxu0 0
    %1076 = vmatpush2.bf16.msra.mxu0 0
    %1077 = vmatprep.subr.bf16.mxu0 0
    %1078 = vmatpush2.bf16.msra.mxu0 0
    %1079 = vmatprep.subr.bf16.mxu0 0
    %1080 = vmatpush2.bf16.msra.mxu0 0
    %1081 = vmatprep.mubr.bf16.mxu0 0
    %1082 = vmatmul.mubr.bf16.gmra.mxu0 %v851
    %v1083 = vpop.f32.mrf.mxu0
    %v1084 = vadd.f32 0.0, %v1083
    %v1085 = vpop.f32.mrf.mxu0
    %v1086 = vadd.f32 0.0, %v1085
    %v1087 = vpop.f32.mrf.mxu0
    %v1088 = vadd.f32 0.0, %v1087
    %v1089 = vpop.f32.mrf.mxu0
    %v1090 = vadd.f32 0.0, %v1089
    %1091 = vdwg.mxu0
    %1092 = vmatprep.subr.bf16.mxu0 %v1016
    %1093 = vmatpush1.bf16.msra.mxu0 %v1015
    %1094 = vmatprep.subr.bf16.mxu0 %v1012
    %1095 = vmatpush1.bf16.msra.mxu0 %v1011
    %1096 = vmatprep.subr.bf16.mxu0 %v1008
    %1097 = vmatpush1.bf16.msra.mxu0 %v1007
    %1098 = vmatprep.subr.bf16.mxu0 %v1004
    %1099 = vmatpush1.bf16.msra.mxu0 %v1003
    %1100 = vmatprep.subr.bf16.mxu0 %v1000
    %1101 = vmatpush1.bf16.msra.mxu0 %v999
    %1102 = vmatprep.subr.bf16.mxu0 %v996
    %1103 = vmatpush1.bf16.msra.mxu0 %v995
    %1104 = vmatprep.subr.bf16.mxu0 %v992
    %1105 = vmatpush1.bf16.msra.mxu0 %v991
    %1106 = vmatprep.subr.bf16.mxu0 %v988
    %1107 = vmatpush1.bf16.msra.mxu0 %v987
    %1108 = vmatprep.subr.bf16.mxu0 0
    %1109 = vmatpush2.bf16.msra.mxu0 0
    %1110 = vmatprep.subr.bf16.mxu0 0
    %1111 = vmatpush2.bf16.msra.mxu0 0
    %1112 = vmatprep.subr.bf16.mxu0 0
    %1113 = vmatpush2.bf16.msra.mxu0 0
    %1114 = vmatprep.subr.bf16.mxu0 0
    %1115 = vmatpush2.bf16.msra.mxu0 0
    %1116 = vmatprep.subr.bf16.mxu0 0
    %1117 = vmatpush2.bf16.msra.mxu0 0
    %1118 = vmatprep.subr.bf16.mxu0 0
    %1119 = vmatpush2.bf16.msra.mxu0 0
    %1120 = vmatprep.subr.bf16.mxu0 0
    %1121 = vmatpush2.bf16.msra.mxu0 0
    %1122 = vmatprep.subr.bf16.mxu0 0
    %1123 = vmatpush2.bf16.msra.mxu0 0
    %1124 = vmatprep.mubr.bf16.mxu0 0
    %1125 = vmatmul.mubr.bf16.gmra.mxu0 %v851
    %v1126 = vpop.f32.mrf.mxu0
    %v1127 = vadd.f32 0.0, %v1126
    %v1128 = vpop.f32.mrf.mxu0
    %v1129 = vadd.f32 0.0, %v1128
    %v1130 = vpop.f32.mrf.mxu0
    %v1131 = vadd.f32 0.0, %v1130
    %v1132 = vpop.f32.mrf.mxu0
    %v1133 = vadd.f32 0.0, %v1132
    %1134 = vdwg.mxu0
    %v1135 = vpack.c.bf16 %v1088, %v1084
    %v1136 = vpack.c.bf16 %v1090, %v1086
    %v1137 = vpack.c.bf16 %v1131, %v1127
    %v1138 = vpack.c.bf16 %v1133, %v1129
    %v1140 = vlaneseq
    %v1141 = vshrl.u32 %v1140, 7
    %v1142 = vsub.s32 0, %v1141
    %v1143 = vrot.slane %v888, %v1142
    %v1149 = vunpack.c.l.b16 %v884
    %v1150 = vunpack.c.l.b16 %v885
    %v1151 = vunpack.c.l.b16 %v886
    %v1152 = vunpack.c.l.b16 %v887
    %v1153 = vpack.c.b16 %v1150, %v1149
    %v1154 = vpack.c.b16 %v1152, %v1151
    %vm1155 = vcmask 523264
    %v1157 = vsel %vm1155, %v1153, 0
    %v1160 = vsel %vm1155, %v1154, 0
    %1162 = vmatprep.subr.bf16.mxu0 0
    %1163 = vmatpush1.bf16.msra.mxu0 0
    %1164 = vmatprep.subr.bf16.mxu0 0
    %1165 = vmatpush1.bf16.msra.mxu0 0
    %1166 = vmatprep.subr.bf16.mxu0 0
    %1167 = vmatpush1.bf16.msra.mxu0 0
    %1168 = vmatprep.subr.bf16.mxu0 0
    %1169 = vmatpush1.bf16.msra.mxu0 0
    %1170 = vmatprep.subr.bf16.mxu0 0
    %1171 = vmatpush1.bf16.msra.mxu0 %v1138
    %1172 = vmatprep.subr.bf16.mxu0 0
    %1173 = vmatpush1.bf16.msra.mxu0 %v1137
    %1174 = vmatprep.subr.bf16.mxu0 0
    %1175 = vmatpush1.bf16.msra.mxu0 %v1136
    %1176 = vmatprep.subr.bf16.mxu0 0
    %1177 = vmatpush1.bf16.msra.mxu0 %v1135
    %1178 = vmatprep.subr.bf16.mxu0 0
    %1179 = vmatpush2.bf16.msra.mxu0 0
    %1180 = vmatprep.subr.bf16.mxu0 0
    %1181 = vmatpush2.bf16.msra.mxu0 0
    %1182 = vmatprep.subr.bf16.mxu0 0
    %1183 = vmatpush2.bf16.msra.mxu0 0
    %1184 = vmatprep.subr.bf16.mxu0 0
    %1185 = vmatpush2.bf16.msra.mxu0 0
    %1186 = vmatprep.subr.bf16.mxu0 0
    %1187 = vmatpush2.bf16.msra.mxu0 0
    %1188 = vmatprep.subr.bf16.mxu0 0
    %1189 = vmatpush2.bf16.msra.mxu0 0
    %1190 = vmatprep.subr.bf16.mxu0 0
    %1191 = vmatpush2.bf16.msra.mxu0 0
    %1192 = vmatprep.subr.bf16.mxu0 0
    %1193 = vmatpush2.bf16.msra.mxu0 0
    %1194 = vmatprep.mubr.bf16.mxu0 0
    %1195 = vmatmul.mubr.bf16.gmra.mxu0 %v1157
    %v1196 = vpop.f32.mrf.mxu0
    %v1197 = vadd.f32 %v1143, %v1196
    %v1198 = vpop.f32.mrf.mxu0
    %v1199 = vpop.f32.mrf.mxu0
    %v1200 = vadd.f32 %v1143, %v1199
    %v1201 = vpop.f32.mrf.mxu0
    %1202 = vmatprep.mubr.bf16.mxu0 0
    %1203 = vmatmul.mubr.bf16.gmra.mxu0 %v1160
    %v1204 = vpop.f32.mrf.mxu0
    %v1205 = vadd.f32 %v1143, %v1204
    %v1206 = vpop.f32.mrf.mxu0
    %v1207 = vpop.f32.mrf.mxu0
    %v1208 = vadd.f32 %v1143, %v1207
    %v1209 = vpop.f32.mrf.mxu0
    %1210 = vdwg.mxu0
    %v1211 = vld [vmem:[#allocation19] sm:$0xff]
    %v1212 = vld [vmem:[#allocation19 + $0x8] sm:$0xff]
    %v1213 = vld [vmem:[#allocation19 + $0x10] sm:$0xff]
    %v1214 = vld [vmem:[#allocation19 + $0x18] sm:$0xff]
    %v1215 = vld [vmem:[#allocation19 + $0x20] sm:$0xff]
    %v1216 = vld [vmem:[#allocation19 + $0x28] sm:$0xff]
    %v1217 = vld [vmem:[#allocation19 + $0x30] sm:$0xff]
    %v1218 = vld [vmem:[#allocation19 + $0x38] sm:$0xff]
    %v1219 = vld [vmem:[#allocation19 + $0x40] sm:$0xff]
    %v1220 = vld [vmem:[#allocation19 + $0x48] sm:$0xff]
    %v1221 = vld [vmem:[#allocation19 + $0x50] sm:$0xff]
    %v1222 = vld [vmem:[#allocation19 + $0x58] sm:$0xff]
    %v1223 = vld [vmem:[#allocation19 + $0x60] sm:$0xff]
    %v1224 = vld [vmem:[#allocation19 + $0x68] sm:$0xff]
    %v1225 = vld [vmem:[#allocation19 + $0x70] sm:$0xff]
    %v1226 = vld [vmem:[#allocation19 + $0x78] sm:$0xff]
    %v1227 = vld [vmem:[#allocation21] sm:$0x1]
    %v1228 = vld [vmem:[#allocation22] sm:$0x1]
    %v1229 = vadd.f32 %v1197, %v1200
    %v1230 = vadd.f32 %v1229, %v1205
    %v1231 = vadd.f32 %v1230, %v1208
    %v1232 = vrot.slane %v1231, 4
    %v1233 = vadd.f32 %v1231, %v1232
    %v1234 = vrot.slane %v1233, 2
    %v1235 = vadd.f32 %v1233, %v1234
    %v1236 = vrot.slane %v1235, 1
    %v1237 = vadd.f32 %v1235, %v1236
    %v1238 = vmul.f32 %v1197, %v1197
    %v1239 = vmul.f32 %v1200, %v1200
    %v1240 = vmul.f32 %v1205, %v1205
    %v1241 = vmul.f32 %v1208, %v1208
    %v1242 = vadd.f32 %v1238, %v1239
    %v1243 = vadd.f32 %v1242, %v1240
    %v1244 = vadd.f32 %v1243, %v1241
    %v1245 = vrot.slane %v1244, 4
    %v1246 = vadd.f32 %v1244, %v1245
    %v1247 = vrot.slane %v1246, 2
    %v1248 = vadd.f32 %v1246, %v1247
    %v1249 = vrot.slane %v1248, 1
    %v1250 = vadd.f32 %v1248, %v1249
    %v1251 = vsel %vm733, %v1237, %v1250
    %1252 = vmatprep.subr.mxu0 0.0
    %1253 = vmatpush1.msra.mxu0 %v1226
    %1254 = vmatprep.subr.mxu0 0.0
    %1255 = vmatpush1.msra.mxu0 %v1225
    %1256 = vmatprep.subr.mxu0 0.0
    %1257 = vmatpush1.msra.mxu0 %v1224
    %1258 = vmatprep.subr.mxu0 0.0
    %1259 = vmatpush1.msra.mxu0 %v1223
    %1260 = vmatprep.subr.mxu0 0.0
    %1261 = vmatpush1.msra.mxu0 %v1222
    %1262 = vmatprep.subr.mxu0 0.0
    %1263 = vmatpush1.msra.mxu0 %v1221
    %1264 = vmatprep.subr.mxu0 0.0
    %1265 = vmatpush1.msra.mxu0 %v1220
    %1266 = vmatprep.subr.mxu0 0.0
    %1267 = vmatpush1.msra.mxu0 %v1219
    %1268 = vmatprep.subr.mxu0 0.0
    %1269 = vmatpush1.msra.mxu0 %v1218
    %1270 = vmatprep.subr.mxu0 0.0
    %1271 = vmatpush1.msra.mxu0 %v1217
    %1272 = vmatprep.subr.mxu0 0.0
    %1273 = vmatpush1.msra.mxu0 %v1216
    %1274 = vmatprep.subr.mxu0 0.0
    %1275 = vmatpush1.msra.mxu0 %v1215
    %1276 = vmatprep.subr.mxu0 0.0
    %1277 = vmatpush1.msra.mxu0 %v1214
    %1278 = vmatprep.subr.mxu0 0.0
    %1279 = vmatpush1.msra.mxu0 %v1213
    %1280 = vmatprep.subr.mxu0 0.0
    %1281 = vmatpush1.msra.mxu0 %v1212
    %1282 = vmatprep.subr.mxu0 0.0
    %1283 = vmatpush1.msra.mxu0 %v1211
    %1284 = vmatprep.subr.mxu0 0.0
    %1285 = vmatpush2.msra.mxu0 0.0
    %1286 = vmatprep.subr.mxu0 0.0
    %1287 = vmatpush2.msra.mxu0 0.0
    %1288 = vmatprep.subr.mxu0 0.0
    %1289 = vmatpush2.msra.mxu0 0.0
    %1290 = vmatprep.subr.mxu0 0.0
    %1291 = vmatpush2.msra.mxu0 0.0
    %1292 = vmatprep.subr.mxu0 0.0
    %1293 = vmatpush2.msra.mxu0 0.0
    %1294 = vmatprep.subr.mxu0 0.0
    %1295 = vmatpush2.msra.mxu0 0.0
    %1296 = vmatprep.subr.mxu0 0.0
    %1297 = vmatpush2.msra.mxu0 0.0
    %1298 = vmatprep.subr.mxu0 0.0
    %1299 = vmatpush2.msra.mxu0 0.0
    %1300 = vmatprep.subr.mxu0 0.0
    %1301 = vmatpush2.msra.mxu0 0.0
    %1302 = vmatprep.subr.mxu0 0.0
    %1303 = vmatpush2.msra.mxu0 0.0
    %1304 = vmatprep.subr.mxu0 0.0
    %1305 = vmatpush2.msra.mxu0 0.0
    %1306 = vmatprep.subr.mxu0 0.0
    %1307 = vmatpush2.msra.mxu0 0.0
    %1308 = vmatprep.subr.mxu0 0.0
    %1309 = vmatpush2.msra.mxu0 0.0
    %1310 = vmatprep.subr.mxu0 0.0
    %1311 = vmatpush2.msra.mxu0 0.0
    %1312 = vmatprep.subr.mxu0 0.0
    %1313 = vmatpush2.msra.mxu0 0.0
    %1314 = vmatprep.subr.mxu0 0.0
    %1315 = vmatpush2.msra.mxu0 0.0
    %1316 = vmatprep.mubr.f32.mxu0 0.0
    %1317 = vmatmul.mubr.f32.gmra.mxu0 %v1251
    %v1318 = vpop.f32.mrf.mxu0
    %v1319 = vadd.f32 0.0, %v1318
    %v1320 = vpop.f32.mrf.mxu0
    %1321 = vdwg.mxu0
    %v1322 = vmul.f32 %v1319, %v1319
    %v1324 = vrot.slane %v1322, 7
    %v1326 = vsub.f32 %v1319, %v1324
    %v1327 = vmax.f32 %v1326, 0.0
    %v1328 = vadd.f32 %v1327, 1e-05
    %v1329 = vrsqrt.pop %v1328
    %v1332 = vunpack.c.l.s4 1966171168
    %v1333 = vunpack.c.0.s8 %v1332
    %v1334 = vlaneseq
    %v1335 = vshrl.u32 %v1334, 7
    %v1336 = vsub.s32 %v1333, %v1335
    %v1337 = vrot.slane %v1329, %v1336
    %v1338 = vcombine.high %v1337, %v1337
    %v1340 = vunpack.c.l.s4 1966171168
    %v1341 = vunpack.c.0.s8 %v1340
    %v1342 = vlaneseq
    %v1343 = vshrl.u32 %v1342, 7
    %v1344 = vsub.s32 %v1341, %v1343
    %v1345 = vrot.slane %v1338, %v1344
    %v1347 = vmul.f32 %v1227, %v1345
    %v1348 = vmul.f32 %v1319, %v1347
    %v1349 = vsub.f32 %v1228, %v1348
    %v1351 = vlaneseq
    %v1352 = vshrl.u32 %v1351, 7
    %v1353 = vsub.s32 0, %v1352
    %v1354 = vrot.slane %v1347, %v1353
    %v1356 = vmul.f32 %v1197, %v1354
    %v1357 = vmul.f32 %v1200, %v1354
    %v1358 = vmul.f32 %v1205, %v1354
    %v1359 = vmul.f32 %v1208, %v1354
    %v1361 = vlaneseq
    %v1362 = vshrl.u32 %v1361, 7
    %v1363 = vsub.s32 0, %v1362
    %v1364 = vrot.slane %v1349, %v1363
    %v1366 = vadd.f32 %v1356, %v1364
    %v1367 = vadd.f32 %v1357, %v1364
    %v1368 = vadd.f32 %v1358, %v1364
    %v1369 = vadd.f32 %v1359, %v1364
    %v1370 = vmax.f32 %v1366, 0.0
    %v1371 = vmax.f32 %v1367, 0.0
    %v1372 = vmax.f32 %v1368, 0.0
    %v1373 = vmax.f32 %v1369, 0.0
    %v1374 = vpack.c.bf16 %v1371, %v1370
    %v1375 = vpack.c.bf16 %v1373, %v1372
    %v1376 = vld [vmem:[#allocation24] sm:$0xff]
    %v1377 = vld [vmem:[#allocation24 + $0x8] sm:$0xff]
    %v1378 = vld [vmem:[#allocation24 + $0x10] sm:$0xff]
    %v1379 = vld [vmem:[#allocation24 + $0x18] sm:$0xff]
    %v1380 = vld [vmem:[#allocation24 + $0x20] sm:$0xff]
    %v1381 = vld [vmem:[#allocation24 + $0x28] sm:$0xff]
    %v1382 = vld [vmem:[#allocation24 + $0x30] sm:$0xff]
    %v1383 = vld [vmem:[#allocation24 + $0x38] sm:$0xff]
    %v1384 = vld [vmem:[#allocation24 + $0x40] sm:$0xff]
    %v1385 = vld [vmem:[#allocation24 + $0x48] sm:$0xff]
    %v1386 = vld [vmem:[#allocation24 + $0x50] sm:$0xff]
    %v1387 = vld [vmem:[#allocation24 + $0x58] sm:$0xff]
    %v1388 = vld [vmem:[#allocation24 + $0x60] sm:$0xff]
    %v1389 = vld [vmem:[#allocation24 + $0x68] sm:$0xff]
    %v1390 = vld [vmem:[#allocation24 + $0x70] sm:$0xff]
    %v1391 = vld [vmem:[#allocation24 + $0x78] sm:$0xff]
    %v1392 = vld [vmem:[#allocation24 + $0x80] sm:$0xff]
    %v1393 = vld [vmem:[#allocation24 + $0x88] sm:$0xff]
    %v1394 = vld [vmem:[#allocation24 + $0x90] sm:$0xff]
    %v1395 = vld [vmem:[#allocation24 + $0x98] sm:$0xff]
    %v1396 = vld [vmem:[#allocation24 + $0xa0] sm:$0xff]
    %v1397 = vld [vmem:[#allocation24 + $0xa8] sm:$0xff]
    %v1398 = vld [vmem:[#allocation24 + $0xb0] sm:$0xff]
    %v1399 = vld [vmem:[#allocation24 + $0xb8] sm:$0xff]
    %v1400 = vld [vmem:[#allocation24 + $0xc0] sm:$0xff]
    %v1401 = vld [vmem:[#allocation24 + $0xc8] sm:$0xff]
    %v1402 = vld [vmem:[#allocation24 + $0xd0] sm:$0xff]
    %v1403 = vld [vmem:[#allocation24 + $0xd8] sm:$0xff]
    %v1404 = vld [vmem:[#allocation24 + $0xe0] sm:$0xff]
    %v1405 = vld [vmem:[#allocation24 + $0xe8] sm:$0xff]
    %v1406 = vld [vmem:[#allocation24 + $0xf0] sm:$0xff]
    %v1407 = vld [vmem:[#allocation24 + $0xf8] sm:$0xff]
    %v1408 = vld [vmem:[%s18] sm:$0xf]
    %v1409 = vld [vmem:[%s18 + $0x4] sm:$0xf]
    %v1410 = vld [vmem:[%s18 + $0x8] sm:$0xf]
    %v1411 = vld [vmem:[%s18 + $0xc] sm:$0xf]
    %v1412 = vld [vmem:[%s18 + $0x10] sm:$0xf]
    %v1413 = vld [vmem:[%s18 + $0x14] sm:$0xf]
    %v1414 = vld [vmem:[%s18 + $0x18] sm:$0xf]
    %v1415 = vld [vmem:[%s18 + $0x1c] sm:$0xf]
    %v1416 = vld [vmem:[#allocation25] sm:$0x1]
    %v1449 = vunpack.c.l.b16 %v1376
    %v1450 = vunpack.c.h.b16 %v1376
    %v1451 = vunpack.c.l.b16 %v1377
    %v1452 = vunpack.c.h.b16 %v1377
    %v1453 = vunpack.c.l.b16 %v1378
    %v1454 = vunpack.c.h.b16 %v1378
    %v1455 = vunpack.c.l.b16 %v1379
    %v1456 = vunpack.c.h.b16 %v1379
    %v1457 = vunpack.c.l.b16 %v1380
    %v1458 = vunpack.c.h.b16 %v1380
    %v1459 = vunpack.c.l.b16 %v1381
    %v1460 = vunpack.c.h.b16 %v1381
    %v1461 = vunpack.c.l.b16 %v1382
    %v1462 = vunpack.c.h.b16 %v1382
    %v1463 = vunpack.c.l.b16 %v1383
    %v1464 = vunpack.c.h.b16 %v1383
    %v1465 = vunpack.c.l.b16 %v1384
    %v1466 = vunpack.c.h.b16 %v1384
    %v1467 = vunpack.c.l.b16 %v1385
    %v1468 = vunpack.c.h.b16 %v1385
    %v1469 = vunpack.c.l.b16 %v1386
    %v1470 = vunpack.c.h.b16 %v1386
    %v1471 = vunpack.c.l.b16 %v1387
    %v1472 = vunpack.c.h.b16 %v1387
    %v1473 = vunpack.c.l.b16 %v1388
    %v1474 = vunpack.c.h.b16 %v1388
    %v1475 = vunpack.c.l.b16 %v1389
    %v1476 = vunpack.c.h.b16 %v1389
    %v1477 = vunpack.c.l.b16 %v1390
    %v1478 = vunpack.c.h.b16 %v1390
    %v1479 = vunpack.c.l.b16 %v1391
    %v1480 = vunpack.c.h.b16 %v1391
    %v1481 = vunpack.c.l.b16 %v1392
    %v1482 = vunpack.c.h.b16 %v1392
    %v1483 = vunpack.c.l.b16 %v1393
    %v1484 = vunpack.c.h.b16 %v1393
    %v1485 = vunpack.c.l.b16 %v1394
    %v1486 = vunpack.c.h.b16 %v1394
    %v1487 = vunpack.c.l.b16 %v1395
    %v1488 = vunpack.c.h.b16 %v1395
    %v1489 = vunpack.c.l.b16 %v1396
    %v1490 = vunpack.c.h.b16 %v1396
    %v1491 = vunpack.c.l.b16 %v1397
    %v1492 = vunpack.c.h.b16 %v1397
    %v1493 = vunpack.c.l.b16 %v1398
    %v1494 = vunpack.c.h.b16 %v1398
    %v1495 = vunpack.c.l.b16 %v1399
    %v1496 = vunpack.c.h.b16 %v1399
    %v1497 = vunpack.c.l.b16 %v1400
    %v1498 = vunpack.c.h.b16 %v1400
    %v1499 = vunpack.c.l.b16 %v1401
    %v1500 = vunpack.c.h.b16 %v1401
    %v1501 = vunpack.c.l.b16 %v1402
    %v1502 = vunpack.c.h.b16 %v1402
    %v1503 = vunpack.c.l.b16 %v1403
    %v1504 = vunpack.c.h.b16 %v1403
    %v1505 = vunpack.c.l.b16 %v1404
    %v1506 = vunpack.c.h.b16 %v1404
    %v1507 = vunpack.c.l.b16 %v1405
    %v1508 = vunpack.c.h.b16 %v1405
    %v1509 = vunpack.c.l.b16 %v1406
    %v1510 = vunpack.c.h.b16 %v1406
    %v1511 = vunpack.c.l.b16 %v1407
    %v1512 = vunpack.c.h.b16 %v1407
    %v1513 = vpack.c.b16 %v1453, %v1449
    %v1514 = vpack.c.b16 %v1454, %v1450
    %v1515 = vpack.c.b16 %v1455, %v1451
    %v1516 = vpack.c.b16 %v1456, %v1452
    %v1517 = vpack.c.b16 %v1461, %v1457
    %v1518 = vpack.c.b16 %v1462, %v1458
    %v1519 = vpack.c.b16 %v1463, %v1459
    %v1520 = vpack.c.b16 %v1464, %v1460
    %v1521 = vpack.c.b16 %v1469, %v1465
    %v1522 = vpack.c.b16 %v1470, %v1466
    %v1523 = vpack.c.b16 %v1471, %v1467
    %v1524 = vpack.c.b16 %v1472, %v1468
    %v1525 = vpack.c.b16 %v1477, %v1473
    %v1526 = vpack.c.b16 %v1478, %v1474
    %v1527 = vpack.c.b16 %v1479, %v1475
    %v1528 = vpack.c.b16 %v1480, %v1476
    %v1529 = vpack.c.b16 %v1485, %v1481
    %v1530 = vpack.c.b16 %v1486, %v1482
    %v1531 = vpack.c.b16 %v1487, %v1483
    %v1532 = vpack.c.b16 %v1488, %v1484
    %v1533 = vpack.c.b16 %v1493, %v1489
    %v1534 = vpack.c.b16 %v1494, %v1490
    %v1535 = vpack.c.b16 %v1495, %v1491
    %v1536 = vpack.c.b16 %v1496, %v1492
    %v1537 = vpack.c.b16 %v1501, %v1497
    %v1538 = vpack.c.b16 %v1502, %v1498
    %v1539 = vpack.c.b16 %v1503, %v1499
    %v1540 = vpack.c.b16 %v1504, %v1500
    %v1541 = vpack.c.b16 %v1509, %v1505
    %v1542 = vpack.c.b16 %v1510, %v1506
    %v1543 = vpack.c.b16 %v1511, %v1507
    %v1544 = vpack.c.b16 %v1512, %v1508
    %1577 = vmatprep.subr.bf16.mxu0 %v1542
    %1578 = vmatpush1.bf16.msra.mxu0 %v1541
    %1579 = vmatprep.subr.bf16.mxu0 %v1538
    %1580 = vmatpush1.bf16.msra.mxu0 %v1537
    %1581 = vmatprep.subr.bf16.mxu0 %v1534
    %1582 = vmatpush1.bf16.msra.mxu0 %v1533
    %1583 = vmatprep.subr.bf16.mxu0 %v1530
    %1584 = vmatpush1.bf16.msra.mxu0 %v1529
    %1585 = vmatprep.subr.bf16.mxu0 %v1526
    %1586 = vmatpush1.bf16.msra.mxu0 %v1525
    %1587 = vmatprep.subr.bf16.mxu0 %v1522
    %1588 = vmatpush1.bf16.msra.mxu0 %v1521
    %1589 = vmatprep.subr.bf16.mxu0 %v1518
    %1590 = vmatpush1.bf16.msra.mxu0 %v1517
    %1591 = vmatprep.subr.bf16.mxu0 %v1514
    %1592 = vmatpush1.bf16.msra.mxu0 %v1513
    %1593 = vmatprep.subr.bf16.mxu0 0
    %1594 = vmatpush2.bf16.msra.mxu0 0
    %1595 = vmatprep.subr.bf16.mxu0 0
    %1596 = vmatpush2.bf16.msra.mxu0 0
    %1597 = vmatprep.subr.bf16.mxu0 0
    %1598 = vmatpush2.bf16.msra.mxu0 0
    %1599 = vmatprep.subr.bf16.mxu0 0
    %1600 = vmatpush2.bf16.msra.mxu0 0
    %1601 = vmatprep.subr.bf16.mxu0 0
    %1602 = vmatpush2.bf16.msra.mxu0 0
    %1603 = vmatprep.subr.bf16.mxu0 0
    %1604 = vmatpush2.bf16.msra.mxu0 0
    %1605 = vmatprep.subr.bf16.mxu0 0
    %1606 = vmatpush2.bf16.msra.mxu0 0
    %1607 = vmatprep.subr.bf16.mxu0 0
    %1608 = vmatpush2.bf16.msra.mxu0 0
    %1609 = vmatprep.mubr.bf16.mxu0 0
    %1610 = vmatmul.mubr.bf16.gmra.mxu0 %v1374
    %v1611 = vpop.f32.mrf.mxu0
    %v1612 = vadd.f32 0.0, %v1611
    %v1613 = vpop.f32.mrf.mxu0
    %v1614 = vadd.f32 0.0, %v1613
    %v1615 = vpop.f32.mrf.mxu0
    %v1616 = vadd.f32 0.0, %v1615
    %v1617 = vpop.f32.mrf.mxu0
    %v1618 = vadd.f32 0.0, %v1617
    %1619 = vmatprep.mubr.bf16.mxu0 0
    %1620 = vmatmul.mubr.bf16.gmra.mxu0 %v1375
    %v1621 = vpop.f32.mrf.mxu0
    %v1622 = vadd.f32 0.0, %v1621
    %v1623 = vpop.f32.mrf.mxu0
    %v1624 = vadd.f32 0.0, %v1623
    %v1625 = vpop.f32.mrf.mxu0
    %v1626 = vadd.f32 0.0, %v1625
    %v1627 = vpop.f32.mrf.mxu0
    %v1628 = vadd.f32 0.0, %v1627
    %1629 = vdwg.mxu0
    %1630 = vmatprep.subr.bf16.mxu0 %v1544
    %1631 = vmatpush1.bf16.msra.mxu0 %v1543
    %1632 = vmatprep.subr.bf16.mxu0 %v1540
    %1633 = vmatpush1.bf16.msra.mxu0 %v1539
    %1634 = vmatprep.subr.bf16.mxu0 %v1536
    %1635 = vmatpush1.bf16.msra.mxu0 %v1535
    %1636 = vmatprep.subr.bf16.mxu0 %v1532
    %1637 = vmatpush1.bf16.msra.mxu0 %v1531
    %1638 = vmatprep.subr.bf16.mxu0 %v1528
    %1639 = vmatpush1.bf16.msra.mxu0 %v1527
    %1640 = vmatprep.subr.bf16.mxu0 %v1524
    %1641 = vmatpush1.bf16.msra.mxu0 %v1523
    %1642 = vmatprep.subr.bf16.mxu0 %v1520
    %1643 = vmatpush1.bf16.msra.mxu0 %v1519
    %1644 = vmatprep.subr.bf16.mxu0 %v1516
    %1645 = vmatpush1.bf16.msra.mxu0 %v1515
    %1646 = vmatprep.subr.bf16.mxu0 0
    %1647 = vmatpush2.bf16.msra.mxu0 0
    %1648 = vmatprep.subr.bf16.mxu0 0
    %1649 = vmatpush2.bf16.msra.mxu0 0
    %1650 = vmatprep.subr.bf16.mxu0 0
    %1651 = vmatpush2.bf16.msra.mxu0 0
    %1652 = vmatprep.subr.bf16.mxu0 0
    %1653 = vmatpush2.bf16.msra.mxu0 0
    %1654 = vmatprep.subr.bf16.mxu0 0
    %1655 = vmatpush2.bf16.msra.mxu0 0
    %1656 = vmatprep.subr.bf16.mxu0 0
    %1657 = vmatpush2.bf16.msra.mxu0 0
    %1658 = vmatprep.subr.bf16.mxu0 0
    %1659 = vmatpush2.bf16.msra.mxu0 0
    %1660 = vmatprep.subr.bf16.mxu0 0
    %1661 = vmatpush2.bf16.msra.mxu0 0
    %1662 = vmatprep.mubr.bf16.mxu0 0
    %1663 = vmatmul.mubr.bf16.gmra.mxu0 %v1374
    %v1664 = vpop.f32.mrf.mxu0
    %v1665 = vadd.f32 0.0, %v1664
    %v1666 = vpop.f32.mrf.mxu0
    %v1667 = vadd.f32 0.0, %v1666
    %v1668 = vpop.f32.mrf.mxu0
    %v1669 = vadd.f32 0.0, %v1668
    %v1670 = vpop.f32.mrf.mxu0
    %v1671 = vadd.f32 0.0, %v1670
    %1672 = vmatprep.mubr.bf16.mxu0 0
    %1673 = vmatmul.mubr.bf16.gmra.mxu0 %v1375
    %v1674 = vpop.f32.mrf.mxu0
    %v1675 = vadd.f32 0.0, %v1674
    %v1676 = vpop.f32.mrf.mxu0
    %v1677 = vadd.f32 0.0, %v1676
    %v1678 = vpop.f32.mrf.mxu0
    %v1679 = vadd.f32 0.0, %v1678
    %v1680 = vpop.f32.mrf.mxu0
    %v1681 = vadd.f32 0.0, %v1680
    %1682 = vdwg.mxu0
    %v1683 = vpack.c.bf16 %v1616, %v1612
    %v1684 = vpack.c.bf16 %v1626, %v1622
    %v1685 = vpack.c.bf16 %v1618, %v1614
    %v1686 = vpack.c.bf16 %v1628, %v1624
    %v1687 = vpack.c.bf16 %v1669, %v1665
    %v1688 = vpack.c.bf16 %v1679, %v1675
    %v1689 = vpack.c.bf16 %v1671, %v1667
    %v1690 = vpack.c.bf16 %v1681, %v1677
    %v1692 = vlaneseq
    %v1693 = vshrl.u32 %v1692, 7
    %v1694 = vsub.s32 0, %v1693
    %v1695 = vrot.slane %v1416, %v1694
    %v1705 = vunpack.c.l.b16 %v1408
    %v1706 = vunpack.c.l.b16 %v1409
    %v1707 = vunpack.c.l.b16 %v1410
    %v1708 = vunpack.c.l.b16 %v1411
    %v1709 = vunpack.c.l.b16 %v1412
    %v1710 = vunpack.c.l.b16 %v1413
    %v1711 = vunpack.c.l.b16 %v1414
    %v1712 = vunpack.c.l.b16 %v1415
    %v1713 = vpack.c.b16 %v1706, %v1705
    %v1714 = vpack.c.b16 %v1708, %v1707
    %v1715 = vpack.c.b16 %v1710, %v1709
    %v1716 = vpack.c.b16 %v1712, %v1711
    %1721 = vmatprep.subr.bf16.mxu0 0
    %1722 = vmatpush1.bf16.msra.mxu0 %v1690
    %1723 = vmatprep.subr.bf16.mxu0 0
    %1724 = vmatpush1.bf16.msra.mxu0 %v1689
    %1725 = vmatprep.subr.bf16.mxu0 0
    %1726 = vmatpush1.bf16.msra.mxu0 %v1688
    %1727 = vmatprep.subr.bf16.mxu0 0
    %1728 = vmatpush1.bf16.msra.mxu0 %v1687
    %1729 = vmatprep.subr.bf16.mxu0 0
    %1730 = vmatpush1.bf16.msra.mxu0 %v1686
    %1731 = vmatprep.subr.bf16.mxu0 0
    %1732 = vmatpush1.bf16.msra.mxu0 %v1685
    %1733 = vmatprep.subr.bf16.mxu0 0
    %1734 = vmatpush1.bf16.msra.mxu0 %v1684
    %1735 = vmatprep.subr.bf16.mxu0 0
    %1736 = vmatpush1.bf16.msra.mxu0 %v1683
    %1737 = vmatprep.subr.bf16.mxu0 0
    %1738 = vmatpush2.bf16.msra.mxu0 0
    %1739 = vmatprep.subr.bf16.mxu0 0
    %1740 = vmatpush2.bf16.msra.mxu0 0
    %1741 = vmatprep.subr.bf16.mxu0 0
    %1742 = vmatpush2.bf16.msra.mxu0 0
    %1743 = vmatprep.subr.bf16.mxu0 0
    %1744 = vmatpush2.bf16.msra.mxu0 0
    %1745 = vmatprep.subr.bf16.mxu0 0
    %1746 = vmatpush2.bf16.msra.mxu0 0
    %1747 = vmatprep.subr.bf16.mxu0 0
    %1748 = vmatpush2.bf16.msra.mxu0 0
    %1749 = vmatprep.subr.bf16.mxu0 0
    %1750 = vmatpush2.bf16.msra.mxu0 0
    %1751 = vmatprep.subr.bf16.mxu0 0
    %1752 = vmatpush2.bf16.msra.mxu0 0
    %1753 = vmatprep.mubr.bf16.mxu0 0
    %1754 = vmatmul.mubr.bf16.gmra.mxu0 %v1713
    %v1755 = vpop.f32.mrf.mxu0
    %v1756 = vadd.f32 %v1695, %v1755
    %v1757 = vpop.f32.mrf.mxu0
    %v1758 = vpop.f32.mrf.mxu0
    %v1759 = vadd.f32 %v1695, %v1758
    %v1760 = vpop.f32.mrf.mxu0
    %1761 = vmatprep.mubr.bf16.mxu0 0
    %1762 = vmatmul.mubr.bf16.gmra.mxu0 %v1714
    %v1763 = vpop.f32.mrf.mxu0
    %v1764 = vadd.f32 %v1695, %v1763
    %v1765 = vpop.f32.mrf.mxu0
    %v1766 = vpop.f32.mrf.mxu0
    %v1767 = vadd.f32 %v1695, %v1766
    %v1768 = vpop.f32.mrf.mxu0
    %1769 = vmatprep.mubr.bf16.mxu0 0
    %1770 = vmatmul.mubr.bf16.gmra.mxu0 %v1715
    %v1771 = vpop.f32.mrf.mxu0
    %v1772 = vadd.f32 %v1695, %v1771
    %v1773 = vpop.f32.mrf.mxu0
    %v1774 = vpop.f32.mrf.mxu0
    %v1775 = vadd.f32 %v1695, %v1774
    %v1776 = vpop.f32.mrf.mxu0
    %1777 = vmatprep.mubr.bf16.mxu0 0
    %1778 = vmatmul.mubr.bf16.gmra.mxu0 %v1716
    %v1779 = vpop.f32.mrf.mxu0
    %v1780 = vadd.f32 %v1695, %v1779
    %v1781 = vpop.f32.mrf.mxu0
    %v1782 = vpop.f32.mrf.mxu0
    %v1783 = vadd.f32 %v1695, %v1782
    %v1784 = vpop.f32.mrf.mxu0
    %1785 = vdwg.mxu0
    %v1786 = vld [vmem:[#allocation27] sm:$0xff]
    %v1787 = vld [vmem:[#allocation27 + $0x8] sm:$0xff]
    %v1788 = vld [vmem:[#allocation27 + $0x10] sm:$0xff]
    %v1789 = vld [vmem:[#allocation27 + $0x18] sm:$0xff]
    %v1790 = vld [vmem:[#allocation27 + $0x20] sm:$0xff]
    %v1791 = vld [vmem:[#allocation27 + $0x28] sm:$0xff]
    %v1792 = vld [vmem:[#allocation27 + $0x30] sm:$0xff]
    %v1793 = vld [vmem:[#allocation27 + $0x38] sm:$0xff]
    %v1794 = vld [vmem:[#allocation27 + $0x40] sm:$0xff]
    %v1795 = vld [vmem:[#allocation27 + $0x48] sm:$0xff]
    %v1796 = vld [vmem:[#allocation27 + $0x50] sm:$0xff]
    %v1797 = vld [vmem:[#allocation27 + $0x58] sm:$0xff]
    %v1798 = vld [vmem:[#allocation27 + $0x60] sm:$0xff]
    %v1799 = vld [vmem:[#allocation27 + $0x68] sm:$0xff]
    %v1800 = vld [vmem:[#allocation27 + $0x70] sm:$0xff]
    %v1801 = vld [vmem:[#allocation27 + $0x78] sm:$0xff]
    %v1802 = vld [vmem:[%s21] sm:$0x1]
    %v1803 = vld [vmem:[%s22] sm:$0x1]
    %v1804 = vadd.f32 %v1756, %v1759
    %v1805 = vadd.f32 %v1804, %v1764
    %v1806 = vadd.f32 %v1805, %v1767
    %v1807 = vadd.f32 %v1806, %v1772
    %v1808 = vadd.f32 %v1807, %v1775
    %v1809 = vadd.f32 %v1808, %v1780
    %v1810 = vadd.f32 %v1809, %v1783
    %v1811 = vrot.slane %v1810, 4
    %v1812 = vadd.f32 %v1810, %v1811
    %v1813 = vrot.slane %v1812, 2
    %v1814 = vadd.f32 %v1812, %v1813
    %v1815 = vrot.slane %v1814, 1
    %v1816 = vadd.f32 %v1814, %v1815
    %v1817 = vmul.f32 %v1756, %v1756
    %v1818 = vmul.f32 %v1759, %v1759
    %v1819 = vmul.f32 %v1764, %v1764
    %v1820 = vmul.f32 %v1767, %v1767
    %v1821 = vmul.f32 %v1772, %v1772
    %v1822 = vmul.f32 %v1775, %v1775
    %v1823 = vmul.f32 %v1780, %v1780
    %v1824 = vmul.f32 %v1783, %v1783
    %v1825 = vadd.f32 %v1817, %v1818
    %v1826 = vadd.f32 %v1825, %v1819
    %v1827 = vadd.f32 %v1826, %v1820
    %v1828 = vadd.f32 %v1827, %v1821
    %v1829 = vadd.f32 %v1828, %v1822
    %v1830 = vadd.f32 %v1829, %v1823
    %v1831 = vadd.f32 %v1830, %v1824
    %v1832 = vrot.slane %v1831, 4
    %v1833 = vadd.f32 %v1831, %v1832
    %v1834 = vrot.slane %v1833, 2
    %v1835 = vadd.f32 %v1833, %v1834
    %v1836 = vrot.slane %v1835, 1
    %v1837 = vadd.f32 %v1835, %v1836
    %v1838 = vsel %vm733, %v1816, %v1837
    %1839 = vmatprep.subr.mxu0 0.0
    %1840 = vmatpush1.msra.mxu0 %v1801
    %1841 = vmatprep.subr.mxu0 0.0
    %1842 = vmatpush1.msra.mxu0 %v1800
    %1843 = vmatprep.subr.mxu0 0.0
    %1844 = vmatpush1.msra.mxu0 %v1799
    %1845 = vmatprep.subr.mxu0 0.0
    %1846 = vmatpush1.msra.mxu0 %v1798
    %1847 = vmatprep.subr.mxu0 0.0
    %1848 = vmatpush1.msra.mxu0 %v1797
    %1849 = vmatprep.subr.mxu0 0.0
    %1850 = vmatpush1.msra.mxu0 %v1796
    %1851 = vmatprep.subr.mxu0 0.0
    %1852 = vmatpush1.msra.mxu0 %v1795
    %1853 = vmatprep.subr.mxu0 0.0
    %1854 = vmatpush1.msra.mxu0 %v1794
    %1855 = vmatprep.subr.mxu0 0.0
    %1856 = vmatpush1.msra.mxu0 %v1793
    %1857 = vmatprep.subr.mxu0 0.0
    %1858 = vmatpush1.msra.mxu0 %v1792
    %1859 = vmatprep.subr.mxu0 0.0
    %1860 = vmatpush1.msra.mxu0 %v1791
    %1861 = vmatprep.subr.mxu0 0.0
    %1862 = vmatpush1.msra.mxu0 %v1790
    %1863 = vmatprep.subr.mxu0 0.0
    %1864 = vmatpush1.msra.mxu0 %v1789
    %1865 = vmatprep.subr.mxu0 0.0
    %1866 = vmatpush1.msra.mxu0 %v1788
    %1867 = vmatprep.subr.mxu0 0.0
    %1868 = vmatpush1.msra.mxu0 %v1787
    %1869 = vmatprep.subr.mxu0 0.0
    %1870 = vmatpush1.msra.mxu0 %v1786
    %1871 = vmatprep.subr.mxu0 0.0
    %1872 = vmatpush2.msra.mxu0 0.0
    %1873 = vmatprep.subr.mxu0 0.0
    %1874 = vmatpush2.msra.mxu0 0.0
    %1875 = vmatprep.subr.mxu0 0.0
    %1876 = vmatpush2.msra.mxu0 0.0
    %1877 = vmatprep.subr.mxu0 0.0
    %1878 = vmatpush2.msra.mxu0 0.0
    %1879 = vmatprep.subr.mxu0 0.0
    %1880 = vmatpush2.msra.mxu0 0.0
    %1881 = vmatprep.subr.mxu0 0.0
    %1882 = vmatpush2.msra.mxu0 0.0
    %1883 = vmatprep.subr.mxu0 0.0
    %1884 = vmatpush2.msra.mxu0 0.0
    %1885 = vmatprep.subr.mxu0 0.0
    %1886 = vmatpush2.msra.mxu0 0.0
    %1887 = vmatprep.subr.mxu0 0.0
    %1888 = vmatpush2.msra.mxu0 0.0
    %1889 = vmatprep.subr.mxu0 0.0
    %1890 = vmatpush2.msra.mxu0 0.0
    %1891 = vmatprep.subr.mxu0 0.0
    %1892 = vmatpush2.msra.mxu0 0.0
    %1893 = vmatprep.subr.mxu0 0.0
    %1894 = vmatpush2.msra.mxu0 0.0
    %1895 = vmatprep.subr.mxu0 0.0
    %1896 = vmatpush2.msra.mxu0 0.0
    %1897 = vmatprep.subr.mxu0 0.0
    %1898 = vmatpush2.msra.mxu0 0.0
    %1899 = vmatprep.subr.mxu0 0.0
    %1900 = vmatpush2.msra.mxu0 0.0
    %1901 = vmatprep.subr.mxu0 0.0
    %1902 = vmatpush2.msra.mxu0 0.0
    %1903 = vmatprep.mubr.f32.mxu0 0.0
    %1904 = vmatmul.mubr.f32.gmra.mxu0 %v1838
    %v1905 = vpop.f32.mrf.mxu0
    %v1906 = vadd.f32 0.0, %v1905
    %v1907 = vpop.f32.mrf.mxu0
    %1908 = vdwg.mxu0
    %v1909 = vmul.f32 %v1906, %v1906
    %v1911 = vrot.slane %v1909, 7
    %v1913 = vsub.f32 %v1906, %v1911
    %v1914 = vmax.f32 %v1913, 0.0
    %v1915 = vadd.f32 %v1914, 1e-05
    %v1916 = vrsqrt.pop %v1915
    %v1919 = vunpack.c.l.s4 1966171168
    %v1920 = vunpack.c.0.s8 %v1919
    %v1921 = vlaneseq
    %v1922 = vshrl.u32 %v1921, 7
    %v1923 = vsub.s32 %v1920, %v1922
    %v1924 = vrot.slane %v1916, %v1923
    %v1925 = vcombine.high %v1924, %v1924
    %v1927 = vunpack.c.l.s4 1966171168
    %v1928 = vunpack.c.0.s8 %v1927
    %v1929 = vlaneseq
    %v1930 = vshrl.u32 %v1929, 7
    %v1931 = vsub.s32 %v1928, %v1930
    %v1932 = vrot.slane %v1925, %v1931
    %v1934 = vmul.f32 %v1802, %v1932
    %v1935 = vmul.f32 %v1906, %v1934
    %v1936 = vsub.f32 %v1803, %v1935
    %v1938 = vlaneseq
    %v1939 = vshrl.u32 %v1938, 7
    %v1940 = vsub.s32 0, %v1939
    %v1941 = vrot.slane %v1934, %v1940
    %v1943 = vmul.f32 %v1756, %v1941
    %v1944 = vmul.f32 %v1759, %v1941
    %v1945 = vmul.f32 %v1764, %v1941
    %v1946 = vmul.f32 %v1767, %v1941
    %v1947 = vmul.f32 %v1772, %v1941
    %v1948 = vmul.f32 %v1775, %v1941
    %v1949 = vmul.f32 %v1780, %v1941
    %v1950 = vmul.f32 %v1783, %v1941
    %v1952 = vlaneseq
    %v1953 = vshrl.u32 %v1952, 7
    %v1954 = vsub.s32 0, %v1953
    %v1955 = vrot.slane %v1936, %v1954
    %v1957 = vadd.f32 %v1943, %v1955
    %v1958 = vadd.f32 %v1944, %v1955
    %v1959 = vadd.f32 %v1945, %v1955
    %v1960 = vadd.f32 %v1946, %v1955
    %v1961 = vadd.f32 %v1947, %v1955
    %v1962 = vadd.f32 %v1948, %v1955
    %v1963 = vadd.f32 %v1949, %v1955
    %v1964 = vadd.f32 %v1950, %v1955
    %v1965 = vmax.f32 %v1957, 0.0
    %v1966 = vmax.f32 %v1958, 0.0
    %v1967 = vmax.f32 %v1959, 0.0
    %v1968 = vmax.f32 %v1960, 0.0
    %v1969 = vmax.f32 %v1961, 0.0
    %v1970 = vmax.f32 %v1962, 0.0
    %v1971 = vmax.f32 %v1963, 0.0
    %v1972 = vmax.f32 %v1964, 0.0
    %v1973 = vpack.c.bf16 %v1966, %v1965
    %v1974 = vpack.c.bf16 %v1968, %v1967
    %v1975 = vpack.c.bf16 %v1970, %v1969
    %v1976 = vpack.c.bf16 %v1972, %v1971
    %v1977 = vld [vmem:[#allocation28] sm:$0xff]
    %v1978 = vld [vmem:[#allocation28 + $0x8] sm:$0xf]
    %v1979 = vld [vmem:[#allocation28 + $0xc] sm:$0xff]
    %v1980 = vld [vmem:[#allocation28 + $0x14] sm:$0xf]
    %v1981 = vld [vmem:[#allocation28 + $0x18] sm:$0xff]
    %v1982 = vld [vmem:[#allocation28 + $0x20] sm:$0xf]
    %v1983 = vld [vmem:[#allocation28 + $0x24] sm:$0xff]
    %v1984 = vld [vmem:[#allocation28 + $0x2c] sm:$0xf]
    %v1985 = vld [vmem:[#allocation28 + $0x30] sm:$0xff]
    %v1986 = vld [vmem:[#allocation28 + $0x38] sm:$0xf]
    %v1987 = vld [vmem:[#allocation28 + $0x3c] sm:$0xff]
    %v1988 = vld [vmem:[#allocation28 + $0x44] sm:$0xf]
    %v1989 = vld [vmem:[#allocation28 + $0x48] sm:$0xff]
    %v1990 = vld [vmem:[#allocation28 + $0x50] sm:$0xf]
    %v1991 = vld [vmem:[#allocation28 + $0x54] sm:$0xff]
    %v1992 = vld [vmem:[#allocation28 + $0x5c] sm:$0xf]
    %v1993 = vld [vmem:[#allocation28 + $0x60] sm:$0xff]
    %v1994 = vld [vmem:[#allocation28 + $0x68] sm:$0xf]
    %v1995 = vld [vmem:[#allocation28 + $0x6c] sm:$0xff]
    %v1996 = vld [vmem:[#allocation28 + $0x74] sm:$0xf]
    %v1997 = vld [vmem:[#allocation28 + $0x78] sm:$0xff]
    %v1998 = vld [vmem:[#allocation28 + $0x80] sm:$0xf]
    %v1999 = vld [vmem:[#allocation28 + $0x84] sm:$0xff]
    %v2000 = vld [vmem:[#allocation28 + $0x8c] sm:$0xf]
    %v2001 = vld [vmem:[#allocation28 + $0x90] sm:$0xff]
    %v2002 = vld [vmem:[#allocation28 + $0x98] sm:$0xf]
    %v2003 = vld [vmem:[#allocation28 + $0x9c] sm:$0xff]
    %v2004 = vld [vmem:[#allocation28 + $0xa4] sm:$0xf]
    %v2005 = vld [vmem:[#allocation28 + $0xa8] sm:$0xff]
    %v2006 = vld [vmem:[#allocation28 + $0xb0] sm:$0xf]
    %v2007 = vld [vmem:[#allocation28 + $0xb4] sm:$0xff]
    %v2008 = vld [vmem:[#allocation28 + $0xbc] sm:$0xf]
    %v2009 = vld [vmem:[#allocation30] sm:$0xff]
    %v2010 = vld [vmem:[#allocation30 + $0x8] sm:$0xff]
    %v2011 = vld [vmem:[#allocation30 + $0x10] sm:$0xff]
    %v2012 = vld [vmem:[#allocation30 + $0x18] sm:$0xff]
    %v2013 = vld [vmem:[#allocation30 + $0x20] sm:$0xff]
    %v2014 = vld [vmem:[#allocation30 + $0x28] sm:$0xff]
    %v2015 = vld [vmem:[#allocation30 + $0x30] sm:$0xff]
    %v2016 = vld [vmem:[#allocation30 + $0x38] sm:$0xff]
    %v2017 = vld [vmem:[%s25] sm:$0x1]
    %v2050 = vunpack.c.l.b16 %v1977
    %v2051 = vunpack.c.h.b16 %v1977
    %v2052 = vunpack.c.l.b16 %v1978
    %v2053 = vunpack.c.l.b16 %v1979
    %v2054 = vunpack.c.h.b16 %v1979
    %v2055 = vunpack.c.l.b16 %v1980
    %v2056 = vunpack.c.l.b16 %v1981
    %v2057 = vunpack.c.h.b16 %v1981
    %v2058 = vunpack.c.l.b16 %v1982
    %v2059 = vunpack.c.l.b16 %v1983
    %v2060 = vunpack.c.h.b16 %v1983
    %v2061 = vunpack.c.l.b16 %v1984
    %v2062 = vunpack.c.l.b16 %v1985
    %v2063 = vunpack.c.h.b16 %v1985
    %v2064 = vunpack.c.l.b16 %v1986
    %v2065 = vunpack.c.l.b16 %v1987
    %v2066 = vunpack.c.h.b16 %v1987
    %v2067 = vunpack.c.l.b16 %v1988
    %v2068 = vunpack.c.l.b16 %v1989
    %v2069 = vunpack.c.h.b16 %v1989
    %v2070 = vunpack.c.l.b16 %v1990
    %v2071 = vunpack.c.l.b16 %v1991
    %v2072 = vunpack.c.h.b16 %v1991
    %v2073 = vunpack.c.l.b16 %v1992
    %v2074 = vunpack.c.l.b16 %v1993
    %v2075 = vunpack.c.h.b16 %v1993
    %v2076 = vunpack.c.l.b16 %v1994
    %v2077 = vunpack.c.l.b16 %v1995
    %v2078 = vunpack.c.h.b16 %v1995
    %v2079 = vunpack.c.l.b16 %v1996
    %v2080 = vunpack.c.l.b16 %v1997
    %v2081 = vunpack.c.h.b16 %v1997
    %v2082 = vunpack.c.l.b16 %v1998
    %v2083 = vunpack.c.l.b16 %v1999
    %v2084 = vunpack.c.h.b16 %v1999
    %v2085 = vunpack.c.l.b16 %v2000
    %v2086 = vunpack.c.l.b16 %v2001
    %v2087 = vunpack.c.h.b16 %v2001
    %v2088 = vunpack.c.l.b16 %v2002
    %v2089 = vunpack.c.l.b16 %v2003
    %v2090 = vunpack.c.h.b16 %v2003
    %v2091 = vunpack.c.l.b16 %v2004
    %v2092 = vunpack.c.l.b16 %v2005
    %v2093 = vunpack.c.h.b16 %v2005
    %v2094 = vunpack.c.l.b16 %v2006
    %v2095 = vunpack.c.l.b16 %v2007
    %v2096 = vunpack.c.h.b16 %v2007
    %v2097 = vunpack.c.l.b16 %v2008
    %v2098 = vpack.c.b16 %v2053, %v2050
    %v2099 = vpack.c.b16 %v2054, %v2051
    %v2100 = vpack.c.b16 %v2055, %v2052
    %v2101 = vpack.c.b16 %v2059, %v2056
    %v2102 = vpack.c.b16 %v2060, %v2057
    %v2103 = vpack.c.b16 %v2061, %v2058
    %v2104 = vpack.c.b16 %v2065, %v2062
    %v2105 = vpack.c.b16 %v2066, %v2063
    %v2106 = vpack.c.b16 %v2067, %v2064
    %v2107 = vpack.c.b16 %v2071, %v2068
    %v2108 = vpack.c.b16 %v2072, %v2069
    %v2109 = vpack.c.b16 %v2073, %v2070
    %v2110 = vpack.c.b16 %v2077, %v2074
    %v2111 = vpack.c.b16 %v2078, %v2075
    %v2112 = vpack.c.b16 %v2079, %v2076
    %v2113 = vpack.c.b16 %v2083, %v2080
    %v2114 = vpack.c.b16 %v2084, %v2081
    %v2115 = vpack.c.b16 %v2085, %v2082
    %v2116 = vpack.c.b16 %v2089, %v2086
    %v2117 = vpack.c.b16 %v2090, %v2087
    %v2118 = vpack.c.b16 %v2091, %v2088
    %v2119 = vpack.c.b16 %v2095, %v2092
    %v2120 = vpack.c.b16 %v2096, %v2093
    %v2121 = vpack.c.b16 %v2097, %v2094
    %2146 = vmatprep.subr.bf16.mxu0 %v2120
    %2147 = vmatpush1.bf16.msra.mxu0 %v2119
    %2148 = vmatprep.subr.bf16.mxu0 %v2117
    %2149 = vmatpush1.bf16.msra.mxu0 %v2116
    %2150 = vmatprep.subr.bf16.mxu0 %v2114
    %2151 = vmatpush1.bf16.msra.mxu0 %v2113
    %2152 = vmatprep.subr.bf16.mxu0 %v2111
    %2153 = vmatpush1.bf16.msra.mxu0 %v2110
    %2154 = vmatprep.subr.bf16.mxu0 %v2108
    %2155 = vmatpush1.bf16.msra.mxu0 %v2107
    %2156 = vmatprep.subr.bf16.mxu0 %v2105
    %2157 = vmatpush1.bf16.msra.mxu0 %v2104
    %2158 = vmatprep.subr.bf16.mxu0 %v2102
    %2159 = vmatpush1.bf16.msra.mxu0 %v2101
    %2160 = vmatprep.subr.bf16.mxu0 %v2099
    %2161 = vmatpush1.bf16.msra.mxu0 %v2098
    %2162 = vmatprep.subr.bf16.mxu0 0
    %2163 = vmatpush2.bf16.msra.mxu0 0
    %2164 = vmatprep.subr.bf16.mxu0 0
    %2165 = vmatpush2.bf16.msra.mxu0 0
    %2166 = vmatprep.subr.bf16.mxu0 0
    %2167 = vmatpush2.bf16.msra.mxu0 0
    %2168 = vmatprep.subr.bf16.mxu0 0
    %2169 = vmatpush2.bf16.msra.mxu0 0
    %2170 = vmatprep.subr.bf16.mxu0 0
    %2171 = vmatpush2.bf16.msra.mxu0 0
    %2172 = vmatprep.subr.bf16.mxu0 0
    %2173 = vmatpush2.bf16.msra.mxu0 0
    %2174 = vmatprep.subr.bf16.mxu0 0
    %2175 = vmatpush2.bf16.msra.mxu0 0
    %2176 = vmatprep.subr.bf16.mxu0 0
    %2177 = vmatpush2.bf16.msra.mxu0 0
    %2178 = vmatprep.mubr.bf16.mxu0 0
    %2179 = vmatmul.mubr.bf16.gmra.mxu0 %v1973
    %v2180 = vpop.f32.mrf.mxu0
    %v2181 = vadd.f32 0.0, %v2180
    %v2182 = vpop.f32.mrf.mxu0
    %v2183 = vadd.f32 0.0, %v2182
    %v2184 = vpop.f32.mrf.mxu0
    %v2185 = vadd.f32 0.0, %v2184
    %v2186 = vpop.f32.mrf.mxu0
    %v2187 = vadd.f32 0.0, %v2186
    %2188 = vmatprep.mubr.bf16.mxu0 0
    %2189 = vmatmul.mubr.bf16.gmra.mxu0 %v1974
    %v2190 = vpop.f32.mrf.mxu0
    %v2191 = vadd.f32 0.0, %v2190
    %v2192 = vpop.f32.mrf.mxu0
    %v2193 = vadd.f32 0.0, %v2192
    %v2194 = vpop.f32.mrf.mxu0
    %v2195 = vadd.f32 0.0, %v2194
    %v2196 = vpop.f32.mrf.mxu0
    %v2197 = vadd.f32 0.0, %v2196
    %2198 = vmatprep.mubr.bf16.mxu0 0
    %2199 = vmatmul.mubr.bf16.gmra.mxu0 %v1975
    %v2200 = vpop.f32.mrf.mxu0
    %v2201 = vadd.f32 0.0, %v2200
    %v2202 = vpop.f32.mrf.mxu0
    %v2203 = vadd.f32 0.0, %v2202
    %v2204 = vpop.f32.mrf.mxu0
    %v2205 = vadd.f32 0.0, %v2204
    %v2206 = vpop.f32.mrf.mxu0
    %v2207 = vadd.f32 0.0, %v2206
    %2208 = vmatprep.mubr.bf16.mxu0 0
    %2209 = vmatmul.mubr.bf16.gmra.mxu0 %v1976
    %v2210 = vpop.f32.mrf.mxu0
    %v2211 = vadd.f32 0.0, %v2210
    %v2212 = vpop.f32.mrf.mxu0
    %v2213 = vadd.f32 0.0, %v2212
    %v2214 = vpop.f32.mrf.mxu0
    %v2215 = vadd.f32 0.0, %v2214
    %v2216 = vpop.f32.mrf.mxu0
    %v2217 = vadd.f32 0.0, %v2216
    %2218 = vdwg.mxu0
    %2219 = vmatprep.subr.bf16.mxu0 0
    %2220 = vmatpush1.bf16.msra.mxu0 %v2121
    %2221 = vmatprep.subr.bf16.mxu0 0
    %2222 = vmatpush1.bf16.msra.mxu0 %v2118
    %2223 = vmatprep.subr.bf16.mxu0 0
    %2224 = vmatpush1.bf16.msra.mxu0 %v2115
    %2225 = vmatprep.subr.bf16.mxu0 0
    %2226 = vmatpush1.bf16.msra.mxu0 %v2112
    %2227 = vmatprep.subr.bf16.mxu0 0
    %2228 = vmatpush1.bf16.msra.mxu0 %v2109
    %2229 = vmatprep.subr.bf16.mxu0 0
    %2230 = vmatpush1.bf16.msra.mxu0 %v2106
    %2231 = vmatprep.subr.bf16.mxu0 0
    %2232 = vmatpush1.bf16.msra.mxu0 %v2103
    %2233 = vmatprep.subr.bf16.mxu0 0
    %2234 = vmatpush1.bf16.msra.mxu0 %v2100
    %2235 = vmatprep.subr.bf16.mxu0 0
    %2236 = vmatpush2.bf16.msra.mxu0 0
    %2237 = vmatprep.subr.bf16.mxu0 0
    %2238 = vmatpush2.bf16.msra.mxu0 0
    %2239 = vmatprep.subr.bf16.mxu0 0
    %2240 = vmatpush2.bf16.msra.mxu0 0
    %2241 = vmatprep.subr.bf16.mxu0 0
    %2242 = vmatpush2.bf16.msra.mxu0 0
    %2243 = vmatprep.subr.bf16.mxu0 0
    %2244 = vmatpush2.bf16.msra.mxu0 0
    %2245 = vmatprep.subr.bf16.mxu0 0
    %2246 = vmatpush2.bf16.msra.mxu0 0
    %2247 = vmatprep.subr.bf16.mxu0 0
    %2248 = vmatpush2.bf16.msra.mxu0 0
    %2249 = vmatprep.subr.bf16.mxu0 0
    %2250 = vmatpush2.bf16.msra.mxu0 0
    %2251 = vmatprep.mubr.bf16.mxu0 0
    %2252 = vmatmul.mubr.bf16.gmra.mxu0 %v1973
    %v2253 = vpop.f32.mrf.mxu0
    %v2254 = vadd.f32 0.0, %v2253
    %v2255 = vpop.f32.mrf.mxu0
    %v2256 = vpop.f32.mrf.mxu0
    %v2257 = vadd.f32 0.0, %v2256
    %v2258 = vpop.f32.mrf.mxu0
    %2259 = vmatprep.mubr.bf16.mxu0 0
    %2260 = vmatmul.mubr.bf16.gmra.mxu0 %v1974
    %v2261 = vpop.f32.mrf.mxu0
    %v2262 = vadd.f32 0.0, %v2261
    %v2263 = vpop.f32.mrf.mxu0
    %v2264 = vpop.f32.mrf.mxu0
    %v2265 = vadd.f32 0.0, %v2264
    %v2266 = vpop.f32.mrf.mxu0
    %2267 = vmatprep.mubr.bf16.mxu0 0
    %2268 = vmatmul.mubr.bf16.gmra.mxu0 %v1975
    %v2269 = vpop.f32.mrf.mxu0
    %v2270 = vadd.f32 0.0, %v2269
    %v2271 = vpop.f32.mrf.mxu0
    %v2272 = vpop.f32.mrf.mxu0
    %v2273 = vadd.f32 0.0, %v2272
    %v2274 = vpop.f32.mrf.mxu0
    %2275 = vmatprep.mubr.bf16.mxu0 0
    %2276 = vmatmul.mubr.bf16.gmra.mxu0 %v1976
    %v2277 = vpop.f32.mrf.mxu0
    %v2278 = vadd.f32 0.0, %v2277
    %v2279 = vpop.f32.mrf.mxu0
    %v2280 = vpop.f32.mrf.mxu0
    %v2281 = vadd.f32 0.0, %v2280
    %v2282 = vpop.f32.mrf.mxu0
    %2283 = vdwg.mxu0
    %v2284 = vpack.c.bf16 %v2185, %v2181
    %v2285 = vpack.c.bf16 %v2195, %v2191
    %v2286 = vpack.c.bf16 %v2205, %v2201
    %v2287 = vpack.c.bf16 %v2215, %v2211
    %v2288 = vpack.c.bf16 %v2187, %v2183
    %v2289 = vpack.c.bf16 %v2197, %v2193
    %v2290 = vpack.c.bf16 %v2207, %v2203
    %v2291 = vpack.c.bf16 %v2217, %v2213
    %v2292 = vpack.c.bf16 %v2257, %v2254
    %v2293 = vpack.c.bf16 %v2265, %v2262
    %v2294 = vpack.c.bf16 %v2273, %v2270
    %v2295 = vpack.c.bf16 %v2281, %v2278
    %v2297 = vlaneseq
    %v2298 = vshrl.u32 %v2297, 7
    %v2299 = vsub.s32 0, %v2298
    %v2300 = vrot.slane %v2017, %v2299
    %v2310 = vunpack.c.l.b16 %v2009
    %v2311 = vunpack.c.h.b16 %v2009
    %v2312 = vunpack.c.l.b16 %v2010
    %v2313 = vunpack.c.h.b16 %v2010
    %v2314 = vunpack.c.l.b16 %v2011
    %v2315 = vunpack.c.h.b16 %v2011
    %v2316 = vunpack.c.l.b16 %v2012
    %v2317 = vunpack.c.h.b16 %v2012
    %v2318 = vunpack.c.l.b16 %v2013
    %v2319 = vunpack.c.h.b16 %v2013
    %v2320 = vunpack.c.l.b16 %v2014
    %v2321 = vunpack.c.h.b16 %v2014
    %v2322 = vunpack.c.l.b16 %v2015
    %v2323 = vunpack.c.h.b16 %v2015
    %v2324 = vunpack.c.l.b16 %v2016
    %v2325 = vunpack.c.h.b16 %v2016
    %v2326 = vpack.c.b16 %v2312, %v2310
    %v2327 = vpack.c.b16 %v2313, %v2311
    %v2328 = vpack.c.b16 %v2316, %v2314
    %v2329 = vpack.c.b16 %v2317, %v2315
    %v2330 = vpack.c.b16 %v2320, %v2318
    %v2331 = vpack.c.b16 %v2321, %v2319
    %v2332 = vpack.c.b16 %v2324, %v2322
    %v2333 = vpack.c.b16 %v2325, %v2323
    %v2339 = vsel %vm1155, %v2327, 0
    %v2342 = vsel %vm1155, %v2329, 0
    %v2345 = vsel %vm1155, %v2331, 0
    %v2348 = vsel %vm1155, %v2333, 0
    %2350 = vmatprep.subr.bf16.mxu0 0
    %2351 = vmatpush1.bf16.msra.mxu0 %v2291
    %2352 = vmatprep.subr.bf16.mxu0 0
    %2353 = vmatpush1.bf16.msra.mxu0 %v2290
    %2354 = vmatprep.subr.bf16.mxu0 0
    %2355 = vmatpush1.bf16.msra.mxu0 %v2289
    %2356 = vmatprep.subr.bf16.mxu0 0
    %2357 = vmatpush1.bf16.msra.mxu0 %v2288
    %2358 = vmatprep.subr.bf16.mxu0 0
    %2359 = vmatpush1.bf16.msra.mxu0 %v2287
    %2360 = vmatprep.subr.bf16.mxu0 0
    %2361 = vmatpush1.bf16.msra.mxu0 %v2286
    %2362 = vmatprep.subr.bf16.mxu0 0
    %2363 = vmatpush1.bf16.msra.mxu0 %v2285
    %2364 = vmatprep.subr.bf16.mxu0 0
    %2365 = vmatpush1.bf16.msra.mxu0 %v2284
    %2366 = vmatprep.subr.bf16.mxu0 0
    %2367 = vmatpush2.bf16.msra.mxu0 0
    %2368 = vmatprep.subr.bf16.mxu0 0
    %2369 = vmatpush2.bf16.msra.mxu0 0
    %2370 = vmatprep.subr.bf16.mxu0 0
    %2371 = vmatpush2.bf16.msra.mxu0 0
    %2372 = vmatprep.subr.bf16.mxu0 0
    %2373 = vmatpush2.bf16.msra.mxu0 0
    %2374 = vmatprep.subr.bf16.mxu0 0
    %2375 = vmatpush2.bf16.msra.mxu0 %v2295
    %2376 = vmatprep.subr.bf16.mxu0 0
    %2377 = vmatpush2.bf16.msra.mxu0 %v2294
    %2378 = vmatprep.subr.bf16.mxu0 0
    %2379 = vmatpush2.bf16.msra.mxu0 %v2293
    %2380 = vmatprep.subr.bf16.mxu0 0
    %2381 = vmatpush2.bf16.msra.mxu0 %v2292
    %2382 = vmatprep.mubr.bf16.mxu0 %v2339
    %2383 = vmatmul.mubr.bf16.gmra.mxu0 %v2326
    %v2384 = vpop.f32.mrf.mxu0
    %v2385 = vadd.f32 %v2300, %v2384
    %v2386 = vpop.f32.mrf.mxu0
    %v2387 = vpop.f32.mrf.mxu0
    %v2388 = vadd.f32 %v2300, %v2387
    %v2389 = vpop.f32.mrf.mxu0
    %2390 = vmatprep.mubr.bf16.mxu0 %v2342
    %2391 = vmatmul.mubr.bf16.gmra.mxu0 %v2328
    %v2392 = vpop.f32.mrf.mxu0
    %v2393 = vadd.f32 %v2300, %v2392
    %v2394 = vpop.f32.mrf.mxu0
    %v2395 = vpop.f32.mrf.mxu0
    %v2396 = vadd.f32 %v2300, %v2395
    %v2397 = vpop.f32.mrf.mxu0
    %2398 = vmatprep.mubr.bf16.mxu0 %v2345
    %2399 = vmatmul.mubr.bf16.gmra.mxu0 %v2330
    %v2400 = vpop.f32.mrf.mxu0
    %v2401 = vadd.f32 %v2300, %v2400
    %v2402 = vpop.f32.mrf.mxu0
    %v2403 = vpop.f32.mrf.mxu0
    %v2404 = vadd.f32 %v2300, %v2403
    %v2405 = vpop.f32.mrf.mxu0
    %2406 = vmatprep.mubr.bf16.mxu0 %v2348
    %2407 = vmatmul.mubr.bf16.gmra.mxu0 %v2332
    %v2408 = vpop.f32.mrf.mxu0
    %v2409 = vadd.f32 %v2300, %v2408
    %v2410 = vpop.f32.mrf.mxu0
    %v2411 = vpop.f32.mrf.mxu0
    %v2412 = vadd.f32 %v2300, %v2411
    %v2413 = vpop.f32.mrf.mxu0
    %2414 = vdwg.mxu0
    %2415 = vst [vmem:[%s26] sm:$0xff] %v2385
    %2416 = vst [vmem:[%s26 + $0x8] sm:$0xff] %v2388
    %2417 = vst [vmem:[%s26 + $0x10] sm:$0xff] %v2393
    %2418 = vst [vmem:[%s26 + $0x18] sm:$0xff] %v2396
    %2419 = vst [vmem:[%s26 + $0x20] sm:$0xff] %v2401
    %2420 = vst [vmem:[%s26 + $0x28] sm:$0xff] %v2404
    %2421 = vst [vmem:[%s26 + $0x30] sm:$0xff] %v2409
    %2422 = vst [vmem:[%s26 + $0x38] sm:$0xff] %v2412
    // Predicated region
    $region182: #{apply.1} parent=1 // pred_check
      _
    $region183: #{apply.1} parent=1 // pred_check_branch
      %2424 = sbr.rel (0) target = $region185
    $region184: #{apply.1} parent=1 // pred_region
      _
    $region185: #{apply.1} parent=1 // pred_fallthru
      _
    // Predicated region
    $region186: #{apply.1} parent=1 // pred_check
      _
    $region187: #{apply.1} parent=1 // pred_check_branch
      %2426 = sbr.rel (0) target = $region189
    $region188: #{apply.1} parent=1 // pred_region
      _
    $region189: #{apply.1} parent=1 // pred_fallthru
      _
    %2427 = vsyncpa [#allocation3], 1
    %2428 = vsyncpa [#allocation5], 1
    %2429 = vsyncpa [#allocation8], 1
    %2430 = vsyncpa [#allocation11], 1
    %2431 = vsyncpa [#allocation14], 1
    %2432 = vsyncpa [#allocation17], 1
    %2433 = vsyncpa [#allocation20], 1
    %2434 = vsyncpa [#allocation23], 1
    %2435 = vsyncpa [#allocation26], 1
    %2436 = vsyncpa [#allocation29], 1

</llo_original>
